<compile_context>
chip_gen: v5e
topology: v5e:2x2
jax: 0.10.0
libtpu: 0.0.40
codegen_flags: <defaults>
</compile_context>

<pallas_src>
import functools

import jax
import jax.numpy as jnp
from jax import lax
from jax.experimental import pallas as pl
from jax.experimental.pallas import tpu as pltpu


def _default_gate_dtype():
    """bf16 gate transcendentals on v6e/v7x (bf16 EUP); f32 on v5e and unknown."""
    try:
        kind = jax.devices()[0].device_kind.lower()
    except Exception:
        return jnp.float32
    if ("v6" in kind) or ("v7" in kind) or ("7x" in kind):
        return jnp.bfloat16
    return jnp.float32


def _convlstm_cell_kernel(patch_ref, w_ref, b_ref, wci_ref, wcf_ref, wco_ref,
                          cprev_ref, h_out_ref, c_out_ref, acc_ref, *,
                          Cout, lane_chunk, activation, gate_dtype):
    """One grid step = one batch block (batch folded onto lanes).

    patch_ref : (KKC_pad, LB)    im2col patches, bf16   (LB = b_blk * HW_pad)
    w_ref     : (4*Cout, KKC_pad) packed conv weight, bf16
    b_ref     : (4*Cout, 1)       conv bias, f32
    wci_ref   : (Cout, LB)        W_ci tiled over the batch block, f32
    wcf_ref   : (Cout, LB)        W_cf tiled over the batch block, f32
    wco_ref   : (Cout, LB)        W_co tiled over the batch block, f32
    cprev_ref : (Cout, LB)        previous cell state, f32
    h_out_ref : (Cout, LB)
    c_out_ref : (Cout, LB)        (float32)
    acc_ref   : (4*Cout, LB)      VMEM scratch (f32 conv accumulator)
    """
    # One wide MXU matmul for the whole batch block, staged into VMEM scratch
    # so the gate epilogue can work on small slices (bounds vreg live ranges).
    acc_ref[...] = (jnp.dot(w_ref[...], patch_ref[...],
                            preferred_element_type=jnp.float32)
                    + b_ref[...])

    lanes = h_out_ref.shape[-1]
    num_chunks = lanes // lane_chunk

    def gate_sigmoid(v):
        # sigmoid(x) == 0.5*tanh(0.5*x)+0.5  -> guaranteed single EUP op.
        t = jnp.tanh((0.5 * v).astype(gate_dtype)).astype(jnp.float32)
        return 0.5 * t + 0.5

    if activation == "tanh":
        def gate_act(v):
            return jnp.tanh(v.astype(gate_dtype)).astype(jnp.float32)
    else:  # 'relu' -> pure VALU, no dtype games needed
        def gate_act(v):
            return jnp.maximum(v, 0.0)

    # Elementwise / transcendental epilogue in 128-lane chunks (unrolled).
    def body(j, carry):
        off = pl.multiple_of(j * lane_chunk, lane_chunk)
        sl = pl.ds(off, lane_chunk)
        c_prev = cprev_ref[:, sl]                                   # (Cout, lc)
        i_g = gate_sigmoid(acc_ref[pl.ds(0, Cout), sl]
                           + wci_ref[:, sl] * c_prev)
        f_g = gate_sigmoid(acc_ref[pl.ds(Cout, Cout), sl]
                           + wcf_ref[:, sl] * c_prev)
        g = gate_act(acc_ref[pl.ds(2 * Cout, Cout), sl])
        c_new = f_g * c_prev + i_g * g                              # f32
        o_g = gate_sigmoid(acc_ref[pl.ds(3 * Cout, Cout), sl]
                           + wco_ref[:, sl] * c_new)
        h_new = o_g * gate_act(c_new)
        c_out_ref[:, sl] = c_new.astype(c_out_ref.dtype)
        h_out_ref[:, sl] = h_new.astype(h_out_ref.dtype)
        return carry

    lax.fori_loop(0, num_chunks, body, 0, unroll=True)


def prepare_convlstm_params(conv_w_oikk, conv_b, w_ci, w_cf, w_co,
                            kernel_size, kkc_pad, hw_pad, batch_block):
    """Parameter repacking.  Call once per model (hoist out of a time scan)."""
    K = kernel_size
    Co4, ct, _, _ = conv_w_oikk.shape
    Cout, Hh, Ww = w_ci.shape
    HW = Hh * Ww
    KKC = K * K * ct
    # (4*Cout, ct, K, K) -> (4*Cout, K*K*ct) tap-major / channel-minor, then
    # zero-pad the contraction to a 128-multiple and cast to bf16 (MXU-native).
    w_mat = jnp.transpose(conv_w_oikk, (0, 2, 3, 1)).reshape(Co4, KKC)
    w_mat = jnp.pad(w_mat, ((0, 0), (0, kkc_pad - KKC))).astype(jnp.bfloat16)
    bias = conv_b.reshape(Co4, 1).astype(jnp.float32)

    def prep_peephole(w):
        w2 = w.reshape(Cout, HW).astype(jnp.float32)
        w2 = jnp.pad(w2, ((0, 0), (0, hw_pad - HW)))
        return jnp.tile(w2, (1, batch_block))          # (Cout, b_blk*HW_pad)

    return (w_mat, bias,
            prep_peephole(w_ci), prep_peephole(w_cf), prep_peephole(w_co))


@functools.partial(jax.jit, static_argnames=("kernel_size", "padding",
                                             "activation", "gate_dtype",
                                             "batch_block"))
def convlstm_cell_pallas(x, h_prev, c_prev, conv_w, conv_b, w_ci, w_cf, w_co,
                         kernel_size, padding, activation="tanh",
                         gate_dtype=None, batch_block=None):
    """NCHW (torch-convention) inputs -> Pallas kernel -> NCHW outputs."""
    B, Cin, Hh, Ww = x.shape
    Cout = h_prev.shape[1]
    K, p = kernel_size, padding
    assert Hh + 2 * p - K + 1 == Hh and Ww + 2 * p - K + 1 == Ww, \
        "ConvLSTMCell requires 'same' spatial padding (2*padding == K-1)"
    ct = Cin + Cout
    HW = Hh * Ww
    HWp = ((HW + 127) // 128) * 128            # lane-dense guarantee
    KKC = K * K * ct
    KKCp = ((KKC + 127) // 128) * 128          # 324 -> 384

    if gate_dtype is None:
        gate_dtype = _default_gate_dtype()

    # --- pick the batch block (static; divides B, caps per-block lane width) ---
    if batch_block is None:
        cap = max(1, 4096 // HWp)
        b_blk = 1
        for d in range(1, B + 1):
            if B % d == 0 and d <= cap:
                b_blk = d
    else:
        b_blk = batch_block
    assert B % b_blk == 0
    LB = b_blk * HWp
    lane_chunk = 128

    # --- wrapper-side im2col: (KKC_pad, B*HWp), batch folded onto lanes -------
    xh = jnp.concatenate([x, h_prev], axis=1).astype(jnp.bfloat16)  # (B,ct,H,W)
    xh_pad = jnp.pad(xh, ((0, 0), (0, 0), (p, p), (p, p)))
    taps = [xh_pad[:, :, dy:dy + Hh, dx:dx + Ww]
            for dy in range(K) for dx in range(K)]
    patches = jnp.stack(taps, axis=0)                     # (KK, B, ct, H, W)
    patches = patches.transpose(0, 2, 1, 3, 4).reshape(KKC, B, HW)
    patches = jnp.pad(patches, ((0, KKCp - KKC), (0, 0), (0, HWp - HW)))
    patches = patches.reshape(KKCp, B * HWp)

    # c_prev in the same (Cout, B*HWp) lane layout, f32.
    cprev_l = jnp.transpose(c_prev.astype(jnp.float32).reshape(B, Cout, HW),
                            (1, 0, 2))
    cprev_l = jnp.pad(cprev_l, ((0, 0), (0, 0), (0, HWp - HW)))
    cprev_l = cprev_l.reshape(Cout, B * HWp)

    w_mat, bias, wci_t, wcf_t, wco_t = prepare_convlstm_params(
        conv_w, conv_b, w_ci, w_cf, w_co, K, KKCp, HWp, b_blk)

    kernel = functools.partial(_convlstm_cell_kernel, Cout=Cout,
                               lane_chunk=lane_chunk, activation=activation,
                               gate_dtype=gate_dtype)

    h2, c2 = pl.pallas_call(
        kernel,
        out_shape=(
            jax.ShapeDtypeStruct((Cout, B * HWp), x.dtype),     # H
            jax.ShapeDtypeStruct((Cout, B * HWp), jnp.float32),  # C (always f32)
        ),
        grid_spec=pltpu.PrefetchScalarGridSpec(
            num_scalar_prefetch=0,
            grid=(B // b_blk,),
            in_specs=[
                pl.BlockSpec((KKCp, LB), lambda b: (0, b)),       # patches
                pl.BlockSpec((4 * Cout, KKCp), lambda b: (0, 0)),  # W (shared)
                pl.BlockSpec((4 * Cout, 1), lambda b: (0, 0)),     # bias
                pl.BlockSpec((Cout, LB), lambda b: (0, 0)),        # W_ci tiled
                pl.BlockSpec((Cout, LB), lambda b: (0, 0)),        # W_cf tiled
                pl.BlockSpec((Cout, LB), lambda b: (0, 0)),        # W_co tiled
                pl.BlockSpec((Cout, LB), lambda b: (0, b)),        # C_prev
            ],
            out_specs=[
                pl.BlockSpec((Cout, LB), lambda b: (0, b)),
                pl.BlockSpec((Cout, LB), lambda b: (0, b)),
            ],
            scratch_shapes=[pltpu.VMEM((4 * Cout, LB), jnp.float32)],
        ),
        compiler_params=pltpu.CompilerParams(
            dimension_semantics=("parallel",)),
    )(patches, w_mat, bias, wci_t, wcf_t, wco_t, cprev_l)

    # Back to NCHW (crop the HW padding; small transpose of the batch axis).
    def to_nchw(a):
        a = a.reshape(Cout, B, HWp)[:, :, :HW].reshape(Cout, B, Hh, Ww)
        return jnp.transpose(a, (1, 0, 2, 3))

    return to_nchw(h2), to_nchw(c2)


def convlstm_cell_reference(x, h_prev, c_prev, conv_w, conv_b, w_ci, w_cf, w_co,
                            kernel_size, padding, activation="tanh"):
    """Pure-JAX f32 reference mirroring the PyTorch forward (NCHW)."""
    act = jnp.tanh if activation == "tanh" else (lambda v: jnp.maximum(v, 0.0))
    xh = jnp.concatenate([x, h_prev], axis=1)
    conv_out = lax.conv_general_dilated(
        xh, conv_w, window_strides=(1, 1),
        padding=((padding, padding), (padding, padding)),
        dimension_numbers=("NCHW", "OIHW", "NCHW"))
    conv_out = conv_out + conv_b[None, :, None, None]
    i_conv, f_conv, c_conv, o_conv = jnp.split(conv_out, 4, axis=1)
    input_gate = jax.nn.sigmoid(i_conv + w_ci[None] * c_prev)
    forget_gate = jax.nn.sigmoid(f_conv + w_cf[None] * c_prev)
    c_new = forget_gate * c_prev + input_gate * act(c_conv)
    output_gate = jax.nn.sigmoid(o_conv + w_co[None] * c_new)
    h_new = output_gate * act(c_new)
    return h_new, c_new


if __name__ == "__main__":
    # small, deterministic setup consistent with the module's __init__
    B, Cin, Cout = 2, 4, 32
    Hh = Ww = 16
    K, pad = 3, 1

    key = jax.random.PRNGKey(0)
    keys = jax.random.split(key, 8)

    x = jax.random.normal(keys[0], (B, Cin, Hh, Ww), jnp.float32)
    h_prev = jax.random.normal(keys[1], (B, Cout, Hh, Ww), jnp.float32)
    c_prev = jax.random.normal(keys[2], (B, Cout, Hh, Ww), jnp.float32)

    # nn.Conv2d(in=Cin+Cout, out=4*Cout, kernel_size=K, padding=pad)
    conv_w = 0.05 * jax.random.normal(keys[3], (4 * Cout, Cin + Cout, K, K),
                                      jnp.float32)
    conv_b = 0.05 * jax.random.normal(keys[4], (4 * Cout,), jnp.float32)

    # peephole params: nn.Parameter(torch.Tensor(out_channels, *frame_size))
    xav = (6.0 / (Hh + Ww)) ** 0.5
    w_ci = jax.random.uniform(keys[5], (Cout, Hh, Ww), jnp.float32, -xav, xav)
    w_cf = jax.random.uniform(keys[6], (Cout, Hh, Ww), jnp.float32, -xav, xav)
    w_co = jax.random.uniform(keys[7], (Cout, Hh, Ww), jnp.float32, -xav, xav)

    ok = True
    for act_name in ("tanh", "relu"):
        h_out, c_out = convlstm_cell_pallas(x, h_prev, c_prev, conv_w, conv_b,
                                            w_ci, w_cf, w_co,
                                            kernel_size=K, padding=pad,
                                            activation=act_name)
        jax.block_until_ready((h_out, c_out))

        h_ref, c_ref = convlstm_cell_reference(x, h_prev, c_prev, conv_w,
                                               conv_b, w_ci, w_cf, w_co,
                                               K, pad, activation=act_name)
        # bf16 MXU operands / (possibly) bf16 gate transcendentals, f32 accum
        ok &= bool(jnp.allclose(h_out, h_ref, atol=5e-2, rtol=5e-2))
        ok &= bool(jnp.allclose(c_out, c_ref, atol=5e-2, rtol=5e-2))

    assert ok, "mismatch vs reference"
    print("KERNEL_OK")
</pallas_src>

<mosaic_0001>
module attributes {stable_mosaic.version = 11 : i64} {
  func.func @_convlstm_cell_kernel(%arg0: i32, %arg1: memref<384x512xbf16, #tpu.memory_space<vmem>>, %arg2: memref<128x384xbf16, #tpu.memory_space<vmem>>, %arg3: memref<128x1xf32, #tpu.memory_space<vmem>>, %arg4: memref<32x512xf32, #tpu.memory_space<vmem>>, %arg5: memref<32x512xf32, #tpu.memory_space<vmem>>, %arg6: memref<32x512xf32, #tpu.memory_space<vmem>>, %arg7: memref<32x512xf32, #tpu.memory_space<vmem>>, %arg8: memref<32x512xf32, #tpu.memory_space<vmem>>, %arg9: memref<32x512xf32, #tpu.memory_space<vmem>>, %arg10: memref<128x512xf32, #tpu.memory_space<vmem>>) attributes {dimension_semantics = [#tpu.dimension_semantics<parallel>], iteration_bounds = array<i64: 1>, scalar_prefetch = 0 : i64, scratch_operands = 1 : i64, tpu.core_type = #tpu.core_type<tc>, window_params = [{transform_indices = @transform_0, window_bounds = array<i64: 384, 512>}, {pipeline_mode = #tpu.pipeline_mode<synchronous>, transform_indices = @transform_1, window_bounds = array<i64: 128, 384>}, {pipeline_mode = #tpu.pipeline_mode<synchronous>, transform_indices = @transform_2, window_bounds = array<i64: 128, 1>}, {pipeline_mode = #tpu.pipeline_mode<synchronous>, transform_indices = @transform_3, window_bounds = array<i64: 32, 512>}, {pipeline_mode = #tpu.pipeline_mode<synchronous>, transform_indices = @transform_4, window_bounds = array<i64: 32, 512>}, {pipeline_mode = #tpu.pipeline_mode<synchronous>, transform_indices = @transform_5, window_bounds = array<i64: 32, 512>}, {transform_indices = @transform_6, window_bounds = array<i64: 32, 512>}, {transform_indices = @transform_7, window_bounds = array<i64: 32, 512>}, {transform_indices = @transform_8, window_bounds = array<i64: 32, 512>}]} {
    %c0 = arith.constant 0 : index
    %c0_0 = arith.constant 0 : index
    %0 = vector.load %arg2[%c0, %c0_0] : memref<128x384xbf16, #tpu.memory_space<vmem>>, vector<128x384xbf16>
    %c0_1 = arith.constant 0 : index
    %c0_2 = arith.constant 0 : index
    %1 = vector.load %arg1[%c0_1, %c0_2] : memref<384x512xbf16, #tpu.memory_space<vmem>>, vector<384x512xbf16>
    %cst = arith.constant dense<0.000000e+00> : vector<128x512xf32>
    %2 = tpu.matmul %0, %1, %cst {dimension_numbers = #tpu.dot_dimension_numbers<[1], [0], [0], [1], [0, 0, 1, 1], [], []>} : vector<128x384xbf16>, vector<384x512xbf16>, vector<128x512xf32> -> vector<128x512xf32>
    %c0_3 = arith.constant 0 : index
    %c0_4 = arith.constant 0 : index
    %3 = vector.load %arg3[%c0_3, %c0_4] : memref<128x1xf32, #tpu.memory_space<vmem>>, vector<128x1xf32>
    %4 = vector.broadcast %3 : vector<128x1xf32> to vector<128x512xf32>
    %5 = arith.addf %2, %4 : vector<128x512xf32>
    %c0_5 = arith.constant 0 : index
    %c0_6 = arith.constant 0 : index
    %6 = vector.load %arg10[%c0_5, %c0_6] : memref<128x512xf32, #tpu.memory_space<vmem>>, vector<128x512xf32>
    tpu.vector_store %arg10[%c0_5, %c0_6], %5 {strides = array<i32>} : memref<128x512xf32, #tpu.memory_space<vmem>>, vector<128x512xf32>,
    %c0_i32 = arith.constant 0 : i32
    %c128_i32 = arith.constant 128 : i32
    %7 = arith.muli %c0_i32, %c128_i32 : i32
    %8 = tpu.assume_multiple %7, 128 : i32
    %c0_7 = arith.constant 0 : index
    %9 = arith.index_cast %8 : i32 to index
    %10 = vector.load %arg7[%c0_7, %9] : memref<32x512xf32, #tpu.memory_space<vmem>>, vector<32x128xf32>
    %c0_8 = arith.constant 0 : index
    %11 = arith.index_cast %8 : i32 to index
    %12 = vector.load %arg10[%c0_8, %11] : memref<128x512xf32, #tpu.memory_space<vmem>>, vector<32x128xf32>
    %c0_9 = arith.constant 0 : index
    %13 = arith.index_cast %8 : i32 to index
    %14 = vector.load %arg4[%c0_9, %13] : memref<32x512xf32, #tpu.memory_space<vmem>>, vector<32x128xf32>
    %15 = arith.mulf %14, %10 : vector<32x128xf32>
    %16 = arith.addf %12, %15 : vector<32x128xf32>
    %cst_10 = arith.constant 5.000000e-01 : f32
    %17 = vector.broadcast %cst_10 : f32 to vector<32x128xf32>
    %18 = arith.mulf %17, %16 : vector<32x128xf32>
    %19 = math.tanh %18 : vector<32x128xf32>
    %cst_11 = arith.constant 5.000000e-01 : f32
    %20 = vector.broadcast %cst_11 : f32 to vector<32x128xf32>
    %21 = arith.mulf %20, %19 : vector<32x128xf32>
    %cst_12 = arith.constant 5.000000e-01 : f32
    %22 = vector.broadcast %cst_12 : f32 to vector<32x128xf32>
    %23 = arith.addf %21, %22 : vector<32x128xf32>
    %c32 = arith.constant 32 : index
    %24 = arith.index_cast %8 : i32 to index
    %25 = vector.load %arg10[%c32, %24] : memref<128x512xf32, #tpu.memory_space<vmem>>, vector<32x128xf32>
    %c0_13 = arith.constant 0 : index
    %26 = arith.index_cast %8 : i32 to index
    %27 = vector.load %arg5[%c0_13, %26] : memref<32x512xf32, #tpu.memory_space<vmem>>, vector<32x128xf32>
    %28 = arith.mulf %27, %10 : vector<32x128xf32>
    %29 = arith.addf %25, %28 : vector<32x128xf32>
    %cst_14 = arith.constant 5.000000e-01 : f32
    %30 = vector.broadcast %cst_14 : f32 to vector<32x128xf32>
    %31 = arith.mulf %30, %29 : vector<32x128xf32>
    %32 = math.tanh %31 : vector<32x128xf32>
    %cst_15 = arith.constant 5.000000e-01 : f32
    %33 = vector.broadcast %cst_15 : f32 to vector<32x128xf32>
    %34 = arith.mulf %33, %32 : vector<32x128xf32>
    %cst_16 = arith.constant 5.000000e-01 : f32
    %35 = vector.broadcast %cst_16 : f32 to vector<32x128xf32>
    %36 = arith.addf %34, %35 : vector<32x128xf32>
    %c64 = arith.constant 64 : index
    %37 = arith.index_cast %8 : i32 to index
    %38 = vector.load %arg10[%c64, %37] : memref<128x512xf32, #tpu.memory_space<vmem>>, vector<32x128xf32>
    %39 = math.tanh %38 : vector<32x128xf32>
    %40 = arith.mulf %36, %10 : vector<32x128xf32>
    %41 = arith.mulf %23, %39 : vector<32x128xf32>
    %42 = arith.addf %40, %41 : vector<32x128xf32>
    %c96 = arith.constant 96 : index
    %43 = arith.index_cast %8 : i32 to index
    %44 = vector.load %arg10[%c96, %43] : memref<128x512xf32, #tpu.memory_space<vmem>>, vector<32x128xf32>
    %c0_17 = arith.constant 0 : index
    %45 = arith.index_cast %8 : i32 to index
    %46 = vector.load %arg6[%c0_17, %45] : memref<32x512xf32, #tpu.memory_space<vmem>>, vector<32x128xf32>
    %47 = arith.mulf %46, %42 : vector<32x128xf32>
    %48 = arith.addf %44, %47 : vector<32x128xf32>
    %cst_18 = arith.constant 5.000000e-01 : f32
    %49 = vector.broadcast %cst_18 : f32 to vector<32x128xf32>
    %50 = arith.mulf %49, %48 : vector<32x128xf32>
    %51 = math.tanh %50 : vector<32x128xf32>
    %cst_19 = arith.constant 5.000000e-01 : f32
    %52 = vector.broadcast %cst_19 : f32 to vector<32x128xf32>
    %53 = arith.mulf %52, %51 : vector<32x128xf32>
    %cst_20 = arith.constant 5.000000e-01 : f32
    %54 = vector.broadcast %cst_20 : f32 to vector<32x128xf32>
    %55 = arith.addf %53, %54 : vector<32x128xf32>
    %56 = math.tanh %42 : vector<32x128xf32>
    %57 = arith.mulf %55, %56 : vector<32x128xf32>
    %c0_21 = arith.constant 0 : index
    %58 = arith.index_cast %8 : i32 to index
    %59 = vector.load %arg9[%c0_21, %58] : memref<32x512xf32, #tpu.memory_space<vmem>>, vector<32x128xf32>
    tpu.vector_store %arg9[%c0_21, %58], %42 {strides = array<i32>} : memref<32x512xf32, #tpu.memory_space<vmem>>, vector<32x128xf32>,
    %c0_22 = arith.constant 0 : index
    %60 = arith.index_cast %8 : i32 to index
    %61 = vector.load %arg8[%c0_22, %60] : memref<32x512xf32, #tpu.memory_space<vmem>>, vector<32x128xf32>
    tpu.vector_store %arg8[%c0_22, %60], %57 {strides = array<i32>} : memref<32x512xf32, #tpu.memory_space<vmem>>, vector<32x128xf32>,
    %c1_i32 = arith.constant 1 : i32
    %c128_i32_23 = arith.constant 128 : i32
    %62 = arith.muli %c1_i32, %c128_i32_23 : i32
    %63 = tpu.assume_multiple %62, 128 : i32
    %c0_24 = arith.constant 0 : index
    %64 = arith.index_cast %63 : i32 to index
    %65 = vector.load %arg7[%c0_24, %64] : memref<32x512xf32, #tpu.memory_space<vmem>>, vector<32x128xf32>
    %c0_25 = arith.constant 0 : index
    %66 = arith.index_cast %63 : i32 to index
    %67 = vector.load %arg10[%c0_25, %66] : memref<128x512xf32, #tpu.memory_space<vmem>>, vector<32x128xf32>
    %c0_26 = arith.constant 0 : index
    %68 = arith.index_cast %63 : i32 to index
    %69 = vector.load %arg4[%c0_26, %68] : memref<32x512xf32, #tpu.memory_space<vmem>>, vector<32x128xf32>
    %70 = arith.mulf %69, %65 : vector<32x128xf32>
    %71 = arith.addf %67, %70 : vector<32x128xf32>
    %cst_27 = arith.constant 5.000000e-01 : f32
    %72 = vector.broadcast %cst_27 : f32 to vector<32x128xf32>
    %73 = arith.mulf %72, %71 : vector<32x128xf32>
    %74 = math.tanh %73 : vector<32x128xf32>
    %cst_28 = arith.constant 5.000000e-01 : f32
    %75 = vector.broadcast %cst_28 : f32 to vector<32x128xf32>
    %76 = arith.mulf %75, %74 : vector<32x128xf32>
    %cst_29 = arith.constant 5.000000e-01 : f32
    %77 = vector.broadcast %cst_29 : f32 to vector<32x128xf32>
    %78 = arith.addf %76, %77 : vector<32x128xf32>
    %c32_30 = arith.constant 32 : index
    %79 = arith.index_cast %63 : i32 to index
    %80 = vector.load %arg10[%c32_30, %79] : memref<128x512xf32, #tpu.memory_space<vmem>>, vector<32x128xf32>
    %c0_31 = arith.constant 0 : index
    %81 = arith.index_cast %63 : i32 to index
    %82 = vector.load %arg5[%c0_31, %81] : memref<32x512xf32, #tpu.memory_space<vmem>>, vector<32x128xf32>
    %83 = arith.mulf %82, %65 : vector<32x128xf32>
    %84 = arith.addf %80, %83 : vector<32x128xf32>
    %cst_32 = arith.constant 5.000000e-01 : f32
    %85 = vector.broadcast %cst_32 : f32 to vector<32x128xf32>
    %86 = arith.mulf %85, %84 : vector<32x128xf32>
    %87 = math.tanh %86 : vector<32x128xf32>
    %cst_33 = arith.constant 5.000000e-01 : f32
    %88 = vector.broadcast %cst_33 : f32 to vector<32x128xf32>
    %89 = arith.mulf %88, %87 : vector<32x128xf32>
    %cst_34 = arith.constant 5.000000e-01 : f32
    %90 = vector.broadcast %cst_34 : f32 to vector<32x128xf32>
    %91 = arith.addf %89, %90 : vector<32x128xf32>
    %c64_35 = arith.constant 64 : index
    %92 = arith.index_cast %63 : i32 to index
    %93 = vector.load %arg10[%c64_35, %92] : memref<128x512xf32, #tpu.memory_space<vmem>>, vector<32x128xf32>
    %94 = math.tanh %93 : vector<32x128xf32>
    %95 = arith.mulf %91, %65 : vector<32x128xf32>
    %96 = arith.mulf %78, %94 : vector<32x128xf32>
    %97 = arith.addf %95, %96 : vector<32x128xf32>
    %c96_36 = arith.constant 96 : index
    %98 = arith.index_cast %63 : i32 to index
    %99 = vector.load %arg10[%c96_36, %98] : memref<128x512xf32, #tpu.memory_space<vmem>>, vector<32x128xf32>
    %c0_37 = arith.constant 0 : index
    %100 = arith.index_cast %63 : i32 to index
    %101 = vector.load %arg6[%c0_37, %100] : memref<32x512xf32, #tpu.memory_space<vmem>>, vector<32x128xf32>
    %102 = arith.mulf %101, %97 : vector<32x128xf32>
    %103 = arith.addf %99, %102 : vector<32x128xf32>
    %cst_38 = arith.constant 5.000000e-01 : f32
    %104 = vector.broadcast %cst_38 : f32 to vector<32x128xf32>
    %105 = arith.mulf %104, %103 : vector<32x128xf32>
    %106 = math.tanh %105 : vector<32x128xf32>
    %cst_39 = arith.constant 5.000000e-01 : f32
    %107 = vector.broadcast %cst_39 : f32 to vector<32x128xf32>
    %108 = arith.mulf %107, %106 : vector<32x128xf32>
    %cst_40 = arith.constant 5.000000e-01 : f32
    %109 = vector.broadcast %cst_40 : f32 to vector<32x128xf32>
    %110 = arith.addf %108, %109 : vector<32x128xf32>
    %111 = math.tanh %97 : vector<32x128xf32>
    %112 = arith.mulf %110, %111 : vector<32x128xf32>
    %c0_41 = arith.constant 0 : index
    %113 = arith.index_cast %63 : i32 to index
    %114 = vector.load %arg9[%c0_41, %113] : memref<32x512xf32, #tpu.memory_space<vmem>>, vector<32x128xf32>
    tpu.vector_store %arg9[%c0_41, %113], %97 {strides = array<i32>} : memref<32x512xf32, #tpu.memory_space<vmem>>, vector<32x128xf32>,
    %c0_42 = arith.constant 0 : index
    %115 = arith.index_cast %63 : i32 to index
    %116 = vector.load %arg8[%c0_42, %115] : memref<32x512xf32, #tpu.memory_space<vmem>>, vector<32x128xf32>
    tpu.vector_store %arg8[%c0_42, %115], %112 {strides = array<i32>} : memref<32x512xf32, #tpu.memory_space<vmem>>, vector<32x128xf32>,
    %c2_i32 = arith.constant 2 : i32
    %c128_i32_43 = arith.constant 128 : i32
    %117 = arith.muli %c2_i32, %c128_i32_43 : i32
    %118 = tpu.assume_multiple %117, 128 : i32
    %c0_44 = arith.constant 0 : index
    %119 = arith.index_cast %118 : i32 to index
    %120 = vector.load %arg7[%c0_44, %119] : memref<32x512xf32, #tpu.memory_space<vmem>>, vector<32x128xf32>
    %c0_45 = arith.constant 0 : index
    %121 = arith.index_cast %118 : i32 to index
    %122 = vector.load %arg10[%c0_45, %121] : memref<128x512xf32, #tpu.memory_space<vmem>>, vector<32x128xf32>
    %c0_46 = arith.constant 0 : index
    %123 = arith.index_cast %118 : i32 to index
    %124 = vector.load %arg4[%c0_46, %123] : memref<32x512xf32, #tpu.memory_space<vmem>>, vector<32x128xf32>
    %125 = arith.mulf %124, %120 : vector<32x128xf32>
    %126 = arith.addf %122, %125 : vector<32x128xf32>
    %cst_47 = arith.constant 5.000000e-01 : f32
    %127 = vector.broadcast %cst_47 : f32 to vector<32x128xf32>
    %128 = arith.mulf %127, %126 : vector<32x128xf32>
    %129 = math.tanh %128 : vector<32x128xf32>
    %cst_48 = arith.constant 5.000000e-01 : f32
    %130 = vector.broadcast %cst_48 : f32 to vector<32x128xf32>
    %131 = arith.mulf %130, %129 : vector<32x128xf32>
    %cst_49 = arith.constant 5.000000e-01 : f32
    %132 = vector.broadcast %cst_49 : f32 to vector<32x128xf32>
    %133 = arith.addf %131, %132 : vector<32x128xf32>
    %c32_50 = arith.constant 32 : index
    %134 = arith.index_cast %118 : i32 to index
    %135 = vector.load %arg10[%c32_50, %134] : memref<128x512xf32, #tpu.memory_space<vmem>>, vector<32x128xf32>
    %c0_51 = arith.constant 0 : index
    %136 = arith.index_cast %118 : i32 to index
    %137 = vector.load %arg5[%c0_51, %136] : memref<32x512xf32, #tpu.memory_space<vmem>>, vector<32x128xf32>
    %138 = arith.mulf %137, %120 : vector<32x128xf32>
    %139 = arith.addf %135, %138 : vector<32x128xf32>
    %cst_52 = arith.constant 5.000000e-01 : f32
    %140 = vector.broadcast %cst_52 : f32 to vector<32x128xf32>
    %141 = arith.mulf %140, %139 : vector<32x128xf32>
    %142 = math.tanh %141 : vector<32x128xf32>
    %cst_53 = arith.constant 5.000000e-01 : f32
    %143 = vector.broadcast %cst_53 : f32 to vector<32x128xf32>
    %144 = arith.mulf %143, %142 : vector<32x128xf32>
    %cst_54 = arith.constant 5.000000e-01 : f32
    %145 = vector.broadcast %cst_54 : f32 to vector<32x128xf32>
    %146 = arith.addf %144, %145 : vector<32x128xf32>
    %c64_55 = arith.constant 64 : index
    %147 = arith.index_cast %118 : i32 to index
    %148 = vector.load %arg10[%c64_55, %147] : memref<128x512xf32, #tpu.memory_space<vmem>>, vector<32x128xf32>
    %149 = math.tanh %148 : vector<32x128xf32>
    %150 = arith.mulf %146, %120 : vector<32x128xf32>
    %151 = arith.mulf %133, %149 : vector<32x128xf32>
    %152 = arith.addf %150, %151 : vector<32x128xf32>
    %c96_56 = arith.constant 96 : index
    %153 = arith.index_cast %118 : i32 to index
    %154 = vector.load %arg10[%c96_56, %153] : memref<128x512xf32, #tpu.memory_space<vmem>>, vector<32x128xf32>
    %c0_57 = arith.constant 0 : index
    %155 = arith.index_cast %118 : i32 to index
    %156 = vector.load %arg6[%c0_57, %155] : memref<32x512xf32, #tpu.memory_space<vmem>>, vector<32x128xf32>
    %157 = arith.mulf %156, %152 : vector<32x128xf32>
    %158 = arith.addf %154, %157 : vector<32x128xf32>
    %cst_58 = arith.constant 5.000000e-01 : f32
    %159 = vector.broadcast %cst_58 : f32 to vector<32x128xf32>
    %160 = arith.mulf %159, %158 : vector<32x128xf32>
    %161 = math.tanh %160 : vector<32x128xf32>
    %cst_59 = arith.constant 5.000000e-01 : f32
    %162 = vector.broadcast %cst_59 : f32 to vector<32x128xf32>
    %163 = arith.mulf %162, %161 : vector<32x128xf32>
    %cst_60 = arith.constant 5.000000e-01 : f32
    %164 = vector.broadcast %cst_60 : f32 to vector<32x128xf32>
    %165 = arith.addf %163, %164 : vector<32x128xf32>
    %166 = math.tanh %152 : vector<32x128xf32>
    %167 = arith.mulf %165, %166 : vector<32x128xf32>
    %c0_61 = arith.constant 0 : index
    %168 = arith.index_cast %118 : i32 to index
    %169 = vector.load %arg9[%c0_61, %168] : memref<32x512xf32, #tpu.memory_space<vmem>>, vector<32x128xf32>
    tpu.vector_store %arg9[%c0_61, %168], %152 {strides = array<i32>} : memref<32x512xf32, #tpu.memory_space<vmem>>, vector<32x128xf32>,
    %c0_62 = arith.constant 0 : index
    %170 = arith.index_cast %118 : i32 to index
    %171 = vector.load %arg8[%c0_62, %170] : memref<32x512xf32, #tpu.memory_space<vmem>>, vector<32x128xf32>
    tpu.vector_store %arg8[%c0_62, %170], %167 {strides = array<i32>} : memref<32x512xf32, #tpu.memory_space<vmem>>, vector<32x128xf32>,
    %c3_i32 = arith.constant 3 : i32
    %c128_i32_63 = arith.constant 128 : i32
    %172 = arith.muli %c3_i32, %c128_i32_63 : i32
    %173 = tpu.assume_multiple %172, 128 : i32
    %c0_64 = arith.constant 0 : index
    %174 = arith.index_cast %173 : i32 to index
    %175 = vector.load %arg7[%c0_64, %174] : memref<32x512xf32, #tpu.memory_space<vmem>>, vector<32x128xf32>
    %c0_65 = arith.constant 0 : index
    %176 = arith.index_cast %173 : i32 to index
    %177 = vector.load %arg10[%c0_65, %176] : memref<128x512xf32, #tpu.memory_space<vmem>>, vector<32x128xf32>
    %c0_66 = arith.constant 0 : index
    %178 = arith.index_cast %173 : i32 to index
    %179 = vector.load %arg4[%c0_66, %178] : memref<32x512xf32, #tpu.memory_space<vmem>>, vector<32x128xf32>
    %180 = arith.mulf %179, %175 : vector<32x128xf32>
    %181 = arith.addf %177, %180 : vector<32x128xf32>
    %cst_67 = arith.constant 5.000000e-01 : f32
    %182 = vector.broadcast %cst_67 : f32 to vector<32x128xf32>
    %183 = arith.mulf %182, %181 : vector<32x128xf32>
    %184 = math.tanh %183 : vector<32x128xf32>
    %cst_68 = arith.constant 5.000000e-01 : f32
    %185 = vector.broadcast %cst_68 : f32 to vector<32x128xf32>
    %186 = arith.mulf %185, %184 : vector<32x128xf32>
    %cst_69 = arith.constant 5.000000e-01 : f32
    %187 = vector.broadcast %cst_69 : f32 to vector<32x128xf32>
    %188 = arith.addf %186, %187 : vector<32x128xf32>
    %c32_70 = arith.constant 32 : index
    %189 = arith.index_cast %173 : i32 to index
    %190 = vector.load %arg10[%c32_70, %189] : memref<128x512xf32, #tpu.memory_space<vmem>>, vector<32x128xf32>
    %c0_71 = arith.constant 0 : index
    %191 = arith.index_cast %173 : i32 to index
    %192 = vector.load %arg5[%c0_71, %191] : memref<32x512xf32, #tpu.memory_space<vmem>>, vector<32x128xf32>
    %193 = arith.mulf %192, %175 : vector<32x128xf32>
    %194 = arith.addf %190, %193 : vector<32x128xf32>
    %cst_72 = arith.constant 5.000000e-01 : f32
    %195 = vector.broadcast %cst_72 : f32 to vector<32x128xf32>
    %196 = arith.mulf %195, %194 : vector<32x128xf32>
    %197 = math.tanh %196 : vector<32x128xf32>
    %cst_73 = arith.constant 5.000000e-01 : f32
    %198 = vector.broadcast %cst_73 : f32 to vector<32x128xf32>
    %199 = arith.mulf %198, %197 : vector<32x128xf32>
    %cst_74 = arith.constant 5.000000e-01 : f32
    %200 = vector.broadcast %cst_74 : f32 to vector<32x128xf32>
    %201 = arith.addf %199, %200 : vector<32x128xf32>
    %c64_75 = arith.constant 64 : index
    %202 = arith.index_cast %173 : i32 to index
    %203 = vector.load %arg10[%c64_75, %202] : memref<128x512xf32, #tpu.memory_space<vmem>>, vector<32x128xf32>
    %204 = math.tanh %203 : vector<32x128xf32>
    %205 = arith.mulf %201, %175 : vector<32x128xf32>
    %206 = arith.mulf %188, %204 : vector<32x128xf32>
    %207 = arith.addf %205, %206 : vector<32x128xf32>
    %c96_76 = arith.constant 96 : index
    %208 = arith.index_cast %173 : i32 to index
    %209 = vector.load %arg10[%c96_76, %208] : memref<128x512xf32, #tpu.memory_space<vmem>>, vector<32x128xf32>
    %c0_77 = arith.constant 0 : index
    %210 = arith.index_cast %173 : i32 to index
    %211 = vector.load %arg6[%c0_77, %210] : memref<32x512xf32, #tpu.memory_space<vmem>>, vector<32x128xf32>
    %212 = arith.mulf %211, %207 : vector<32x128xf32>
    %213 = arith.addf %209, %212 : vector<32x128xf32>
    %cst_78 = arith.constant 5.000000e-01 : f32
    %214 = vector.broadcast %cst_78 : f32 to vector<32x128xf32>
    %215 = arith.mulf %214, %213 : vector<32x128xf32>
    %216 = math.tanh %215 : vector<32x128xf32>
    %cst_79 = arith.constant 5.000000e-01 : f32
    %217 = vector.broadcast %cst_79 : f32 to vector<32x128xf32>
    %218 = arith.mulf %217, %216 : vector<32x128xf32>
    %cst_80 = arith.constant 5.000000e-01 : f32
    %219 = vector.broadcast %cst_80 : f32 to vector<32x128xf32>
    %220 = arith.addf %218, %219 : vector<32x128xf32>
    %221 = math.tanh %207 : vector<32x128xf32>
    %222 = arith.mulf %220, %221 : vector<32x128xf32>
    %c0_81 = arith.constant 0 : index
    %223 = arith.index_cast %173 : i32 to index
    %224 = vector.load %arg9[%c0_81, %223] : memref<32x512xf32, #tpu.memory_space<vmem>>, vector<32x128xf32>
    tpu.vector_store %arg9[%c0_81, %223], %207 {strides = array<i32>} : memref<32x512xf32, #tpu.memory_space<vmem>>, vector<32x128xf32>,
    %c0_82 = arith.constant 0 : index
    %225 = arith.index_cast %173 : i32 to index
    %226 = vector.load %arg8[%c0_82, %225] : memref<32x512xf32, #tpu.memory_space<vmem>>, vector<32x128xf32>
    tpu.vector_store %arg8[%c0_82, %225], %222 {strides = array<i32>} : memref<32x512xf32, #tpu.memory_space<vmem>>, vector<32x128xf32>,
    %c4_i32 = arith.constant 4 : i32
    return
  }
  func.func @transform_0(%arg0: i32) -> (i32, i32) {
    %c0_i32 = arith.constant 0 : i32
    %c0_i32_0 = arith.constant 0 : i32
    return %c0_i32, %arg0 : i32, i32
  }
  func.func @transform_1(%arg0: i32) -> (i32, i32) {
    %c0_i32 = arith.constant 0 : i32
    %c0_i32_0 = arith.constant 0 : i32
    %c0_i32_1 = arith.constant 0 : i32
    return %c0_i32, %c0_i32_0 : i32, i32
  }
  func.func @transform_2(%arg0: i32) -> (i32, i32) {
    %c0_i32 = arith.constant 0 : i32
    %c0_i32_0 = arith.constant 0 : i32
    %c0_i32_1 = arith.constant 0 : i32
    return %c0_i32, %c0_i32_0 : i32, i32
  }
  func.func @transform_3(%arg0: i32) -> (i32, i32) {
    %c0_i32 = arith.constant 0 : i32
    %c0_i32_0 = arith.constant 0 : i32
    %c0_i32_1 = arith.constant 0 : i32
    return %c0_i32, %c0_i32_0 : i32, i32
  }
  func.func @transform_4(%arg0: i32) -> (i32, i32) {
    %c0_i32 = arith.constant 0 : i32
    %c0_i32_0 = arith.constant 0 : i32
    %c0_i32_1 = arith.constant 0 : i32
    return %c0_i32, %c0_i32_0 : i32, i32
  }
  func.func @transform_5(%arg0: i32) -> (i32, i32) {
    %c0_i32 = arith.constant 0 : i32
    %c0_i32_0 = arith.constant 0 : i32
    %c0_i32_1 = arith.constant 0 : i32
    return %c0_i32, %c0_i32_0 : i32, i32
  }
  func.func @transform_6(%arg0: i32) -> (i32, i32) {
    %c0_i32 = arith.constant 0 : i32
    %c0_i32_0 = arith.constant 0 : i32
    return %c0_i32, %arg0 : i32, i32
  }
  func.func @transform_7(%arg0: i32) -> (i32, i32) {
    %c0_i32 = arith.constant 0 : i32
    %c0_i32_0 = arith.constant 0 : i32
    return %c0_i32, %arg0 : i32, i32
  }
  func.func @transform_8(%arg0: i32) -> (i32, i32) {
    %c0_i32 = arith.constant 0 : i32
    %c0_i32_0 = arith.constant 0 : i32
    return %c0_i32, %arg0 : i32, i32
  }
}

</mosaic_0001>

<llo_original>
// kernel: convlstm_cell_pallas.1
$region0: #{convlstm_cell_pallas.1}
  #allocation0 [shape = 'u32[]', space=smem, size = 0x4, offset = 0x4, fixed_abs, tag = 'smem constant byte address 0x4 - core index']
  #allocation1 [shape = 'u32[72,128]{1,0:T(1,128)}', space=vmem, size = 0x9000, scoped, tag = 'internal scratch']
  #allocation2 [shape = 'f32[128,512]{1,0:T(8,128)}', space=vmem, size = 0x40000, scoped, tag = 'scratch operand']
  %s0 = inlined_call_operand.vmem [shape: bf16[384,512], index: 0, kind: input, shape index: {}]
  %s1 = inlined_call_operand.vmem [shape: bf16[128,384], index: 1, kind: input, shape index: {}]
  %s2 = inlined_call_operand.vmem [shape: f32[128,1], index: 2, kind: input, shape index: {}]
  %s3 = inlined_call_operand.vmem [shape: f32[32,512], index: 3, kind: input, shape index: {}]
  %s4 = inlined_call_operand.vmem [shape: f32[32,512], index: 4, kind: input, shape index: {}]
  %s5 = inlined_call_operand.vmem [shape: f32[32,512], index: 5, kind: input, shape index: {}]
  %s6 = inlined_call_operand.vmem [shape: f32[32,512], index: 6, kind: input, shape index: {}]
  %s7 = inlined_call_operand.vmem [shape: f32[32,512], index: 7, kind: output, shape index: {0}]
  %s8 = inlined_call_operand.vmem [shape: f32[32,512], index: 8, kind: output, shape index: {1}]
  %9 = xla_tuple %s7, %s8
  %s10 = sld [smem:[#allocation0]]
  $region46: #{convlstm_cell_pallas.1} parent=0
    _
  %s12 = ssub.s32 1, %s10
  %s13 = scalar_select 0, %s12, %s10
  // Predicated region
  $region2: #{convlstm_cell_pallas.1} parent=0 // pred_check
    _
  $region3: #{convlstm_cell_pallas.1} parent=0 // pred_check_branch
    %15 = sbr.rel (0) target = $region5
  $region4: #{convlstm_cell_pallas.1} parent=0 // pred_region
    _
  $region5: #{convlstm_cell_pallas.1} parent=0 // pred_fallthru
    _
  // Predicated region
  $region6: #{convlstm_cell_pallas.1} parent=0 // pred_check
    _
  $region7: #{convlstm_cell_pallas.1} parent=0 // pred_check_branch
    %17 = sbr.rel (0) target = $region9
  $region8: #{convlstm_cell_pallas.1} parent=0 // pred_region
    _
  $region9: #{convlstm_cell_pallas.1} parent=0 // pred_fallthru
    _
  // Predicated region
  $region10: #{convlstm_cell_pallas.1} parent=0 // pred_check
    _
  $region11: #{convlstm_cell_pallas.1} parent=0 // pred_check_branch
    %19 = sbr.rel (0) target = $region13
  $region12: #{convlstm_cell_pallas.1} parent=0 // pred_region
    _
  $region13: #{convlstm_cell_pallas.1} parent=0 // pred_fallthru
    _
  // Predicated region
  $region14: #{convlstm_cell_pallas.1} parent=0 // pred_check
    _
  $region15: #{convlstm_cell_pallas.1} parent=0 // pred_check_branch
    %21 = sbr.rel (0) target = $region17
  $region16: #{convlstm_cell_pallas.1} parent=0 // pred_region
    _
  $region17: #{convlstm_cell_pallas.1} parent=0 // pred_fallthru
    _
  // Predicated region
  $region18: #{convlstm_cell_pallas.1} parent=0 // pred_check
    _
  $region19: #{convlstm_cell_pallas.1} parent=0 // pred_check_branch
    %23 = sbr.rel (0) target = $region21
  $region20: #{convlstm_cell_pallas.1} parent=0 // pred_region
    _
  $region21: #{convlstm_cell_pallas.1} parent=0 // pred_fallthru
    _
  // Predicated region
  $region22: #{convlstm_cell_pallas.1} parent=0 // pred_check
    _
  $region23: #{convlstm_cell_pallas.1} parent=0 // pred_check_branch
    %25 = sbr.rel (0) target = $region25
  $region24: #{convlstm_cell_pallas.1} parent=0 // pred_region
    _
  $region25: #{convlstm_cell_pallas.1} parent=0 // pred_fallthru
    _
  // Predicated region
  $region26: #{convlstm_cell_pallas.1} parent=0 // pred_check
    _
  $region27: #{convlstm_cell_pallas.1} parent=0 // pred_check_branch
    %27 = sbr.rel (0) target = $region29
  $region28: #{convlstm_cell_pallas.1} parent=0 // pred_region
    _
  $region29: #{convlstm_cell_pallas.1} parent=0 // pred_fallthru
    _
  %v28 = vld [vmem:[%s1] sm:$0xff]
  %v29 = vld [vmem:[%s1 + $0x8] sm:$0xf]
  %v30 = vld [vmem:[%s1 + $0xc] sm:$0xff]
  %v31 = vld [vmem:[%s1 + $0x14] sm:$0xf]
  %v32 = vld [vmem:[%s1 + $0x18] sm:$0xff]
  %v33 = vld [vmem:[%s1 + $0x20] sm:$0xf]
  %v34 = vld [vmem:[%s1 + $0x24] sm:$0xff]
  %v35 = vld [vmem:[%s1 + $0x2c] sm:$0xf]
  %v36 = vld [vmem:[%s1 + $0x30] sm:$0xff]
  %v37 = vld [vmem:[%s1 + $0x38] sm:$0xf]
  %v38 = vld [vmem:[%s1 + $0x3c] sm:$0xff]
  %v39 = vld [vmem:[%s1 + $0x44] sm:$0xf]
  %v40 = vld [vmem:[%s1 + $0x48] sm:$0xff]
  %v41 = vld [vmem:[%s1 + $0x50] sm:$0xf]
  %v42 = vld [vmem:[%s1 + $0x54] sm:$0xff]
  %v43 = vld [vmem:[%s1 + $0x5c] sm:$0xf]
  %v44 = vld [vmem:[%s1 + $0x60] sm:$0xff]
  %v45 = vld [vmem:[%s1 + $0x68] sm:$0xf]
  %v46 = vld [vmem:[%s1 + $0x6c] sm:$0xff]
  %v47 = vld [vmem:[%s1 + $0x74] sm:$0xf]
  %v48 = vld [vmem:[%s1 + $0x78] sm:$0xff]
  %v49 = vld [vmem:[%s1 + $0x80] sm:$0xf]
  %v50 = vld [vmem:[%s1 + $0x84] sm:$0xff]
  %v51 = vld [vmem:[%s1 + $0x8c] sm:$0xf]
  %v52 = vld [vmem:[%s1 + $0x90] sm:$0xff]
  %v53 = vld [vmem:[%s1 + $0x98] sm:$0xf]
  %v54 = vld [vmem:[%s1 + $0x9c] sm:$0xff]
  %v55 = vld [vmem:[%s1 + $0xa4] sm:$0xf]
  %v56 = vld [vmem:[%s1 + $0xa8] sm:$0xff]
  %v57 = vld [vmem:[%s1 + $0xb0] sm:$0xf]
  %v58 = vld [vmem:[%s1 + $0xb4] sm:$0xff]
  %v59 = vld [vmem:[%s1 + $0xbc] sm:$0xf]
  %v60 = vld [vmem:[%s0] sm:$0xff]
  %v61 = vld [vmem:[%s0 + $0x8] sm:$0xff]
  %v62 = vld [vmem:[%s0 + $0x10] sm:$0xff]
  %v63 = vld [vmem:[%s0 + $0x18] sm:$0xff]
  %v64 = vld [vmem:[%s0 + $0x20] sm:$0xff]
  %v65 = vld [vmem:[%s0 + $0x28] sm:$0xff]
  %v66 = vld [vmem:[%s0 + $0x30] sm:$0xff]
  %v67 = vld [vmem:[%s0 + $0x38] sm:$0xff]
  %v68 = vld [vmem:[%s0 + $0x40] sm:$0xff]
  %v69 = vld [vmem:[%s0 + $0x48] sm:$0xff]
  %v70 = vld [vmem:[%s0 + $0x50] sm:$0xff]
  %v71 = vld [vmem:[%s0 + $0x58] sm:$0xff]
  %v72 = vld [vmem:[%s0 + $0x60] sm:$0xff]
  %v73 = vld [vmem:[%s0 + $0x68] sm:$0xff]
  %v74 = vld [vmem:[%s0 + $0x70] sm:$0xff]
  %v75 = vld [vmem:[%s0 + $0x78] sm:$0xff]
  %v76 = vld [vmem:[%s0 + $0x80] sm:$0xff]
  %v77 = vld [vmem:[%s0 + $0x88] sm:$0xff]
  %v78 = vld [vmem:[%s0 + $0x90] sm:$0xff]
  %v79 = vld [vmem:[%s0 + $0x98] sm:$0xff]
  %v80 = vld [vmem:[%s0 + $0xa0] sm:$0xff]
  %v81 = vld [vmem:[%s0 + $0xa8] sm:$0xff]
  %v82 = vld [vmem:[%s0 + $0xb0] sm:$0xff]
  %v83 = vld [vmem:[%s0 + $0xb8] sm:$0xff]
  %v84 = vld [vmem:[%s0 + $0xc0] sm:$0xff]
  %v85 = vld [vmem:[%s0 + $0xc8] sm:$0xff]
  %v86 = vld [vmem:[%s0 + $0xd0] sm:$0xff]
  %v87 = vld [vmem:[%s0 + $0xd8] sm:$0xff]
  %v88 = vld [vmem:[%s0 + $0xe0] sm:$0xff]
  %v89 = vld [vmem:[%s0 + $0xe8] sm:$0xff]
  %v90 = vld [vmem:[%s0 + $0xf0] sm:$0xff]
  %v91 = vld [vmem:[%s0 + $0xf8] sm:$0xff]
  %v92 = vld [vmem:[%s0 + $0x100] sm:$0xff]
  %v93 = vld [vmem:[%s0 + $0x108] sm:$0xff]
  %v94 = vld [vmem:[%s0 + $0x110] sm:$0xff]
  %v95 = vld [vmem:[%s0 + $0x118] sm:$0xff]
  %v96 = vld [vmem:[%s0 + $0x120] sm:$0xff]
  %v97 = vld [vmem:[%s0 + $0x128] sm:$0xff]
  %v98 = vld [vmem:[%s0 + $0x130] sm:$0xff]
  %v99 = vld [vmem:[%s0 + $0x138] sm:$0xff]
  %v100 = vld [vmem:[%s0 + $0x140] sm:$0xff]
  %v101 = vld [vmem:[%s0 + $0x148] sm:$0xff]
  %v102 = vld [vmem:[%s0 + $0x150] sm:$0xff]
  %v103 = vld [vmem:[%s0 + $0x158] sm:$0xff]
  %v104 = vld [vmem:[%s0 + $0x160] sm:$0xff]
  %v105 = vld [vmem:[%s0 + $0x168] sm:$0xff]
  %v106 = vld [vmem:[%s0 + $0x170] sm:$0xff]
  %v107 = vld [vmem:[%s0 + $0x178] sm:$0xff]
  %v108 = vld [vmem:[%s0 + $0x180] sm:$0xff]
  %v109 = vld [vmem:[%s0 + $0x188] sm:$0xff]
  %v110 = vld [vmem:[%s0 + $0x190] sm:$0xff]
  %v111 = vld [vmem:[%s0 + $0x198] sm:$0xff]
  %v112 = vld [vmem:[%s0 + $0x1a0] sm:$0xff]
  %v113 = vld [vmem:[%s0 + $0x1a8] sm:$0xff]
  %v114 = vld [vmem:[%s0 + $0x1b0] sm:$0xff]
  %v115 = vld [vmem:[%s0 + $0x1b8] sm:$0xff]
  %v116 = vld [vmem:[%s0 + $0x1c0] sm:$0xff]
  %v117 = vld [vmem:[%s0 + $0x1c8] sm:$0xff]
  %v118 = vld [vmem:[%s0 + $0x1d0] sm:$0xff]
  %v119 = vld [vmem:[%s0 + $0x1d8] sm:$0xff]
  %v120 = vld [vmem:[%s0 + $0x1e0] sm:$0xff]
  %v121 = vld [vmem:[%s0 + $0x1e8] sm:$0xff]
  %v122 = vld [vmem:[%s0 + $0x1f0] sm:$0xff]
  %v123 = vld [vmem:[%s0 + $0x1f8] sm:$0xff]
  %v124 = vld [vmem:[%s0 + $0x200] sm:$0xff]
  %v125 = vld [vmem:[%s0 + $0x208] sm:$0xff]
  %v126 = vld [vmem:[%s0 + $0x210] sm:$0xff]
  %v127 = vld [vmem:[%s0 + $0x218] sm:$0xff]
  %v128 = vld [vmem:[%s0 + $0x220] sm:$0xff]
  %v129 = vld [vmem:[%s0 + $0x228] sm:$0xff]
  %v130 = vld [vmem:[%s0 + $0x230] sm:$0xff]
  %v131 = vld [vmem:[%s0 + $0x238] sm:$0xff]
  %v132 = vld [vmem:[%s0 + $0x240] sm:$0xff]
  %v133 = vld [vmem:[%s0 + $0x248] sm:$0xff]
  %v134 = vld [vmem:[%s0 + $0x250] sm:$0xff]
  %v135 = vld [vmem:[%s0 + $0x258] sm:$0xff]
  %v136 = vld [vmem:[%s0 + $0x260] sm:$0xff]
  %v137 = vld [vmem:[%s0 + $0x268] sm:$0xff]
  %v138 = vld [vmem:[%s0 + $0x270] sm:$0xff]
  %v139 = vld [vmem:[%s0 + $0x278] sm:$0xff]
  %v140 = vld [vmem:[%s0 + $0x280] sm:$0xff]
  %v141 = vld [vmem:[%s0 + $0x288] sm:$0xff]
  %v142 = vld [vmem:[%s0 + $0x290] sm:$0xff]
  %v143 = vld [vmem:[%s0 + $0x298] sm:$0xff]
  %v144 = vld [vmem:[%s0 + $0x2a0] sm:$0xff]
  %v145 = vld [vmem:[%s0 + $0x2a8] sm:$0xff]
  %v146 = vld [vmem:[%s0 + $0x2b0] sm:$0xff]
  %v147 = vld [vmem:[%s0 + $0x2b8] sm:$0xff]
  %v148 = vld [vmem:[%s0 + $0x2c0] sm:$0xff]
  %v149 = vld [vmem:[%s0 + $0x2c8] sm:$0xff]
  %v150 = vld [vmem:[%s0 + $0x2d0] sm:$0xff]
  %v151 = vld [vmem:[%s0 + $0x2d8] sm:$0xff]
  %v152 = vld [vmem:[%s0 + $0x2e0] sm:$0xff]
  %v153 = vld [vmem:[%s0 + $0x2e8] sm:$0xff]
  %v154 = vld [vmem:[%s0 + $0x2f0] sm:$0xff]
  %v155 = vld [vmem:[%s0 + $0x2f8] sm:$0xff]
  %v156 = vld [vmem:[%s2] sm:$0xff]
  %v157 = vld [vmem:[%s2 + $0x8] sm:$0xff]
  %v158 = vld [vmem:[%s2 + $0x10] sm:$0xff]
  %v159 = vld [vmem:[%s2 + $0x18] sm:$0xff]
  %v160 = vld [vmem:[%s2 + $0x20] sm:$0xff]
  %v161 = vld [vmem:[%s2 + $0x28] sm:$0xff]
  %v162 = vld [vmem:[%s2 + $0x30] sm:$0xff]
  %v163 = vld [vmem:[%s2 + $0x38] sm:$0xff]
  %v164 = vld [vmem:[%s2 + $0x40] sm:$0xff]
  %v165 = vld [vmem:[%s2 + $0x48] sm:$0xff]
  %v166 = vld [vmem:[%s2 + $0x50] sm:$0xff]
  %v167 = vld [vmem:[%s2 + $0x58] sm:$0xff]
  %v168 = vld [vmem:[%s2 + $0x60] sm:$0xff]
  %v169 = vld [vmem:[%s2 + $0x68] sm:$0xff]
  %v170 = vld [vmem:[%s2 + $0x70] sm:$0xff]
  %v171 = vld [vmem:[%s2 + $0x78] sm:$0xff]
  %173 = vset.pattern.permute.xlu0 0
  %174 = vperm.xlu0 %173, %v156
  %v175 = vpop.permute.xlu0 %174
  %178 = vset.pattern.permute.xlu0 0
  %179 = vperm.xlu0 %178, %v157
  %v180 = vpop.permute.xlu0 %179
  %183 = vset.pattern.permute.xlu0 0
  %184 = vperm.xlu0 %183, %v158
  %v185 = vpop.permute.xlu0 %184
  %188 = vset.pattern.permute.xlu0 0
  %189 = vperm.xlu0 %188, %v159
  %v190 = vpop.permute.xlu0 %189
  %193 = vset.pattern.permute.xlu0 0
  %194 = vperm.xlu0 %193, %v160
  %v195 = vpop.permute.xlu0 %194
  %198 = vset.pattern.permute.xlu0 0
  %199 = vperm.xlu0 %198, %v161
  %v200 = vpop.permute.xlu0 %199
  %203 = vset.pattern.permute.xlu0 0
  %204 = vperm.xlu0 %203, %v162
  %v205 = vpop.permute.xlu0 %204
  %208 = vset.pattern.permute.xlu0 0
  %209 = vperm.xlu0 %208, %v163
  %v210 = vpop.permute.xlu0 %209
  %213 = vset.pattern.permute.xlu0 0
  %214 = vperm.xlu0 %213, %v164
  %v215 = vpop.permute.xlu0 %214
  %218 = vset.pattern.permute.xlu0 0
  %219 = vperm.xlu0 %218, %v165
  %v220 = vpop.permute.xlu0 %219
  %223 = vset.pattern.permute.xlu0 0
  %224 = vperm.xlu0 %223, %v166
  %v225 = vpop.permute.xlu0 %224
  %228 = vset.pattern.permute.xlu0 0
  %229 = vperm.xlu0 %228, %v167
  %v230 = vpop.permute.xlu0 %229
  %233 = vset.pattern.permute.xlu0 0
  %234 = vperm.xlu0 %233, %v168
  %v235 = vpop.permute.xlu0 %234
  %238 = vset.pattern.permute.xlu0 0
  %239 = vperm.xlu0 %238, %v169
  %v240 = vpop.permute.xlu0 %239
  %243 = vset.pattern.permute.xlu0 0
  %244 = vperm.xlu0 %243, %v170
  %v245 = vpop.permute.xlu0 %244
  %248 = vset.pattern.permute.xlu0 0
  %249 = vperm.xlu0 %248, %v171
  %v250 = vpop.permute.xlu0 %249
  %v284 = vunpack.c.l.b16 %v28
  %v285 = vunpack.c.h.b16 %v28
  %v286 = vunpack.c.l.b16 %v29
  %v287 = vunpack.c.l.b16 %v30
  %v288 = vunpack.c.h.b16 %v30
  %v289 = vunpack.c.l.b16 %v31
  %v290 = vunpack.c.l.b16 %v32
  %v291 = vunpack.c.h.b16 %v32
  %v292 = vunpack.c.l.b16 %v33
  %v293 = vunpack.c.l.b16 %v34
  %v294 = vunpack.c.h.b16 %v34
  %v295 = vunpack.c.l.b16 %v35
  %v296 = vunpack.c.l.b16 %v36
  %v297 = vunpack.c.h.b16 %v36
  %v298 = vunpack.c.l.b16 %v37
  %v299 = vunpack.c.l.b16 %v38
  %v300 = vunpack.c.h.b16 %v38
  %v301 = vunpack.c.l.b16 %v39
  %v302 = vunpack.c.l.b16 %v40
  %v303 = vunpack.c.h.b16 %v40
  %v304 = vunpack.c.l.b16 %v41
  %v305 = vunpack.c.l.b16 %v42
  %v306 = vunpack.c.h.b16 %v42
  %v307 = vunpack.c.l.b16 %v43
  %v308 = vunpack.c.l.b16 %v44
  %v309 = vunpack.c.h.b16 %v44
  %v310 = vunpack.c.l.b16 %v45
  %v311 = vunpack.c.l.b16 %v46
  %v312 = vunpack.c.h.b16 %v46
  %v313 = vunpack.c.l.b16 %v47
  %v314 = vunpack.c.l.b16 %v48
  %v315 = vunpack.c.h.b16 %v48
  %v316 = vunpack.c.l.b16 %v49
  %v317 = vunpack.c.l.b16 %v50
  %v318 = vunpack.c.h.b16 %v50
  %v319 = vunpack.c.l.b16 %v51
  %v320 = vunpack.c.l.b16 %v52
  %v321 = vunpack.c.h.b16 %v52
  %v322 = vunpack.c.l.b16 %v53
  %v323 = vunpack.c.l.b16 %v54
  %v324 = vunpack.c.h.b16 %v54
  %v325 = vunpack.c.l.b16 %v55
  %v326 = vunpack.c.l.b16 %v56
  %v327 = vunpack.c.h.b16 %v56
  %v328 = vunpack.c.l.b16 %v57
  %v329 = vunpack.c.l.b16 %v58
  %v330 = vunpack.c.h.b16 %v58
  %v331 = vunpack.c.l.b16 %v59
  %v332 = vpack.c.b16 %v287, %v284
  %v333 = vpack.c.b16 %v288, %v285
  %v334 = vpack.c.b16 %v289, %v286
  %v335 = vpack.c.b16 %v293, %v290
  %v336 = vpack.c.b16 %v294, %v291
  %v337 = vpack.c.b16 %v295, %v292
  %v338 = vpack.c.b16 %v299, %v296
  %v339 = vpack.c.b16 %v300, %v297
  %v340 = vpack.c.b16 %v301, %v298
  %v341 = vpack.c.b16 %v305, %v302
  %v342 = vpack.c.b16 %v306, %v303
  %v343 = vpack.c.b16 %v307, %v304
  %v344 = vpack.c.b16 %v311, %v308
  %v345 = vpack.c.b16 %v312, %v309
  %v346 = vpack.c.b16 %v313, %v310
  %v347 = vpack.c.b16 %v317, %v314
  %v348 = vpack.c.b16 %v318, %v315
  %v349 = vpack.c.b16 %v319, %v316
  %v350 = vpack.c.b16 %v323, %v320
  %v351 = vpack.c.b16 %v324, %v321
  %v352 = vpack.c.b16 %v325, %v322
  %v353 = vpack.c.b16 %v329, %v326
  %v354 = vpack.c.b16 %v330, %v327
  %v355 = vpack.c.b16 %v331, %v328
  %v476 = vunpack.c.l.b16 %v60
  %v477 = vunpack.c.h.b16 %v60
  %v478 = vunpack.c.l.b16 %v61
  %v479 = vunpack.c.h.b16 %v61
  %v480 = vunpack.c.l.b16 %v62
  %v481 = vunpack.c.h.b16 %v62
  %v482 = vunpack.c.l.b16 %v63
  %v483 = vunpack.c.h.b16 %v63
  %v484 = vunpack.c.l.b16 %v64
  %v485 = vunpack.c.h.b16 %v64
  %v486 = vunpack.c.l.b16 %v65
  %v487 = vunpack.c.h.b16 %v65
  %v488 = vunpack.c.l.b16 %v66
  %v489 = vunpack.c.h.b16 %v66
  %v490 = vunpack.c.l.b16 %v67
  %v491 = vunpack.c.h.b16 %v67
  %v492 = vunpack.c.l.b16 %v68
  %v493 = vunpack.c.h.b16 %v68
  %v494 = vunpack.c.l.b16 %v69
  %v495 = vunpack.c.h.b16 %v69
  %v496 = vunpack.c.l.b16 %v70
  %v497 = vunpack.c.h.b16 %v70
  %v498 = vunpack.c.l.b16 %v71
  %v499 = vunpack.c.h.b16 %v71
  %v500 = vunpack.c.l.b16 %v72
  %v501 = vunpack.c.h.b16 %v72
  %v502 = vunpack.c.l.b16 %v73
  %v503 = vunpack.c.h.b16 %v73
  %v504 = vunpack.c.l.b16 %v74
  %v505 = vunpack.c.h.b16 %v74
  %v506 = vunpack.c.l.b16 %v75
  %v507 = vunpack.c.h.b16 %v75
  %v508 = vunpack.c.l.b16 %v76
  %v509 = vunpack.c.h.b16 %v76
  %v510 = vunpack.c.l.b16 %v77
  %v511 = vunpack.c.h.b16 %v77
  %v512 = vunpack.c.l.b16 %v78
  %v513 = vunpack.c.h.b16 %v78
  %v514 = vunpack.c.l.b16 %v79
  %v515 = vunpack.c.h.b16 %v79
  %v516 = vunpack.c.l.b16 %v80
  %v517 = vunpack.c.h.b16 %v80
  %v518 = vunpack.c.l.b16 %v81
  %v519 = vunpack.c.h.b16 %v81
  %v520 = vunpack.c.l.b16 %v82
  %v521 = vunpack.c.h.b16 %v82
  %v522 = vunpack.c.l.b16 %v83
  %v523 = vunpack.c.h.b16 %v83
  %v524 = vunpack.c.l.b16 %v84
  %v525 = vunpack.c.h.b16 %v84
  %v526 = vunpack.c.l.b16 %v85
  %v527 = vunpack.c.h.b16 %v85
  %v528 = vunpack.c.l.b16 %v86
  %v529 = vunpack.c.h.b16 %v86
  %v530 = vunpack.c.l.b16 %v87
  %v531 = vunpack.c.h.b16 %v87
  %v532 = vunpack.c.l.b16 %v88
  %v533 = vunpack.c.h.b16 %v88
  %v534 = vunpack.c.l.b16 %v89
  %v535 = vunpack.c.h.b16 %v89
  %v536 = vunpack.c.l.b16 %v90
  %v537 = vunpack.c.h.b16 %v90
  %v538 = vunpack.c.l.b16 %v91
  %v539 = vunpack.c.h.b16 %v91
  %v540 = vunpack.c.l.b16 %v92
  %v541 = vunpack.c.h.b16 %v92
  %v542 = vunpack.c.l.b16 %v93
  %v543 = vunpack.c.h.b16 %v93
  %v544 = vunpack.c.l.b16 %v94
  %v545 = vunpack.c.h.b16 %v94
  %v546 = vunpack.c.l.b16 %v95
  %v547 = vunpack.c.h.b16 %v95
  %v548 = vunpack.c.l.b16 %v96
  %v549 = vunpack.c.h.b16 %v96
  %v550 = vunpack.c.l.b16 %v97
  %v551 = vunpack.c.h.b16 %v97
  %v552 = vunpack.c.l.b16 %v98
  %v553 = vunpack.c.h.b16 %v98
  %v554 = vunpack.c.l.b16 %v99
  %v555 = vunpack.c.h.b16 %v99
  %v556 = vunpack.c.l.b16 %v100
  %v557 = vunpack.c.h.b16 %v100
  %v558 = vunpack.c.l.b16 %v101
  %v559 = vunpack.c.h.b16 %v101
  %v560 = vunpack.c.l.b16 %v102
  %v561 = vunpack.c.h.b16 %v102
  %v562 = vunpack.c.l.b16 %v103
  %v563 = vunpack.c.h.b16 %v103
  %v564 = vunpack.c.l.b16 %v104
  %v565 = vunpack.c.h.b16 %v104
  %v566 = vunpack.c.l.b16 %v105
  %v567 = vunpack.c.h.b16 %v105
  %v568 = vunpack.c.l.b16 %v106
  %v569 = vunpack.c.h.b16 %v106
  %v570 = vunpack.c.l.b16 %v107
  %v571 = vunpack.c.h.b16 %v107
  %v572 = vunpack.c.l.b16 %v108
  %v573 = vunpack.c.h.b16 %v108
  %v574 = vunpack.c.l.b16 %v109
  %v575 = vunpack.c.h.b16 %v109
  %v576 = vunpack.c.l.b16 %v110
  %v577 = vunpack.c.h.b16 %v110
  %v578 = vunpack.c.l.b16 %v111
  %v579 = vunpack.c.h.b16 %v111
  %v580 = vunpack.c.l.b16 %v112
  %v581 = vunpack.c.h.b16 %v112
  %v582 = vunpack.c.l.b16 %v113
  %v583 = vunpack.c.h.b16 %v113
  %v584 = vunpack.c.l.b16 %v114
  %v585 = vunpack.c.h.b16 %v114
  %v586 = vunpack.c.l.b16 %v115
  %v587 = vunpack.c.h.b16 %v115
  %v588 = vunpack.c.l.b16 %v116
  %v589 = vunpack.c.h.b16 %v116
  %v590 = vunpack.c.l.b16 %v117
  %v591 = vunpack.c.h.b16 %v117
  %v592 = vunpack.c.l.b16 %v118
  %v593 = vunpack.c.h.b16 %v118
  %v594 = vunpack.c.l.b16 %v119
  %v595 = vunpack.c.h.b16 %v119
  %v596 = vunpack.c.l.b16 %v120
  %v597 = vunpack.c.h.b16 %v120
  %v598 = vunpack.c.l.b16 %v121
  %v599 = vunpack.c.h.b16 %v121
  %v600 = vunpack.c.l.b16 %v122
  %v601 = vunpack.c.h.b16 %v122
  %v602 = vunpack.c.l.b16 %v123
  %v603 = vunpack.c.h.b16 %v123
  %v604 = vunpack.c.l.b16 %v124
  %v605 = vunpack.c.h.b16 %v124
  %v606 = vunpack.c.l.b16 %v125
  %v607 = vunpack.c.h.b16 %v125
  %v608 = vunpack.c.l.b16 %v126
  %v609 = vunpack.c.h.b16 %v126
  %v610 = vunpack.c.l.b16 %v127
  %v611 = vunpack.c.h.b16 %v127
  %v612 = vunpack.c.l.b16 %v128
  %v613 = vunpack.c.h.b16 %v128
  %v614 = vunpack.c.l.b16 %v129
  %v615 = vunpack.c.h.b16 %v129
  %v616 = vunpack.c.l.b16 %v130
  %v617 = vunpack.c.h.b16 %v130
  %v618 = vunpack.c.l.b16 %v131
  %v619 = vunpack.c.h.b16 %v131
  %v620 = vunpack.c.l.b16 %v132
  %v621 = vunpack.c.h.b16 %v132
  %v622 = vunpack.c.l.b16 %v133
  %v623 = vunpack.c.h.b16 %v133
  %v624 = vunpack.c.l.b16 %v134
  %v625 = vunpack.c.h.b16 %v134
  %v626 = vunpack.c.l.b16 %v135
  %v627 = vunpack.c.h.b16 %v135
  %v628 = vunpack.c.l.b16 %v136
  %v629 = vunpack.c.h.b16 %v136
  %v630 = vunpack.c.l.b16 %v137
  %v631 = vunpack.c.h.b16 %v137
  %v632 = vunpack.c.l.b16 %v138
  %v633 = vunpack.c.h.b16 %v138
  %v634 = vunpack.c.l.b16 %v139
  %v635 = vunpack.c.h.b16 %v139
  %v636 = vunpack.c.l.b16 %v140
  %v637 = vunpack.c.h.b16 %v140
  %v638 = vunpack.c.l.b16 %v141
  %v639 = vunpack.c.h.b16 %v141
  %v640 = vunpack.c.l.b16 %v142
  %v641 = vunpack.c.h.b16 %v142
  %v642 = vunpack.c.l.b16 %v143
  %v643 = vunpack.c.h.b16 %v143
  %v644 = vunpack.c.l.b16 %v144
  %v645 = vunpack.c.h.b16 %v144
  %v646 = vunpack.c.l.b16 %v145
  %v647 = vunpack.c.h.b16 %v145
  %v648 = vunpack.c.l.b16 %v146
  %v649 = vunpack.c.h.b16 %v146
  %v650 = vunpack.c.l.b16 %v147
  %v651 = vunpack.c.h.b16 %v147
  %v652 = vunpack.c.l.b16 %v148
  %v653 = vunpack.c.h.b16 %v148
  %v654 = vunpack.c.l.b16 %v149
  %v655 = vunpack.c.h.b16 %v149
  %v656 = vunpack.c.l.b16 %v150
  %v657 = vunpack.c.h.b16 %v150
  %v658 = vunpack.c.l.b16 %v151
  %v659 = vunpack.c.h.b16 %v151
  %v660 = vunpack.c.l.b16 %v152
  %v661 = vunpack.c.h.b16 %v152
  %v662 = vunpack.c.l.b16 %v153
  %v663 = vunpack.c.h.b16 %v153
  %v664 = vunpack.c.l.b16 %v154
  %v665 = vunpack.c.h.b16 %v154
  %v666 = vunpack.c.l.b16 %v155
  %v667 = vunpack.c.h.b16 %v155
  %v668 = vpack.c.b16 %v480, %v476
  %v669 = vpack.c.b16 %v481, %v477
  %v670 = vpack.c.b16 %v482, %v478
  %v671 = vpack.c.b16 %v483, %v479
  %v672 = vpack.c.b16 %v488, %v484
  %v673 = vpack.c.b16 %v489, %v485
  %v674 = vpack.c.b16 %v490, %v486
  %v675 = vpack.c.b16 %v491, %v487
  %v676 = vpack.c.b16 %v496, %v492
  %v677 = vpack.c.b16 %v497, %v493
  %v678 = vpack.c.b16 %v498, %v494
  %v679 = vpack.c.b16 %v499, %v495
  %v680 = vpack.c.b16 %v504, %v500
  %v681 = vpack.c.b16 %v505, %v501
  %v682 = vpack.c.b16 %v506, %v502
  %v683 = vpack.c.b16 %v507, %v503
  %v684 = vpack.c.b16 %v512, %v508
  %v685 = vpack.c.b16 %v513, %v509
  %v686 = vpack.c.b16 %v514, %v510
  %v687 = vpack.c.b16 %v515, %v511
  %v688 = vpack.c.b16 %v520, %v516
  %v689 = vpack.c.b16 %v521, %v517
  %v690 = vpack.c.b16 %v522, %v518
  %v691 = vpack.c.b16 %v523, %v519
  %v692 = vpack.c.b16 %v528, %v524
  %v693 = vpack.c.b16 %v529, %v525
  %v694 = vpack.c.b16 %v530, %v526
  %v695 = vpack.c.b16 %v531, %v527
  %v696 = vpack.c.b16 %v536, %v532
  %v697 = vpack.c.b16 %v537, %v533
  %v698 = vpack.c.b16 %v538, %v534
  %v699 = vpack.c.b16 %v539, %v535
  %v700 = vpack.c.b16 %v544, %v540
  %v701 = vpack.c.b16 %v545, %v541
  %v702 = vpack.c.b16 %v546, %v542
  %v703 = vpack.c.b16 %v547, %v543
  %v704 = vpack.c.b16 %v552, %v548
  %v705 = vpack.c.b16 %v553, %v549
  %v706 = vpack.c.b16 %v554, %v550
  %v707 = vpack.c.b16 %v555, %v551
  %v708 = vpack.c.b16 %v560, %v556
  %v709 = vpack.c.b16 %v561, %v557
  %v710 = vpack.c.b16 %v562, %v558
  %v711 = vpack.c.b16 %v563, %v559
  %v712 = vpack.c.b16 %v568, %v564
  %v713 = vpack.c.b16 %v569, %v565
  %v714 = vpack.c.b16 %v570, %v566
  %v715 = vpack.c.b16 %v571, %v567
  %v716 = vpack.c.b16 %v576, %v572
  %v717 = vpack.c.b16 %v577, %v573
  %v718 = vpack.c.b16 %v578, %v574
  %v719 = vpack.c.b16 %v579, %v575
  %v720 = vpack.c.b16 %v584, %v580
  %v721 = vpack.c.b16 %v585, %v581
  %v722 = vpack.c.b16 %v586, %v582
  %v723 = vpack.c.b16 %v587, %v583
  %v724 = vpack.c.b16 %v592, %v588
  %v725 = vpack.c.b16 %v593, %v589
  %v726 = vpack.c.b16 %v594, %v590
  %v727 = vpack.c.b16 %v595, %v591
  %v728 = vpack.c.b16 %v600, %v596
  %v729 = vpack.c.b16 %v601, %v597
  %v730 = vpack.c.b16 %v602, %v598
  %v731 = vpack.c.b16 %v603, %v599
  %v732 = vpack.c.b16 %v608, %v604
  %v733 = vpack.c.b16 %v609, %v605
  %v734 = vpack.c.b16 %v610, %v606
  %v735 = vpack.c.b16 %v611, %v607
  %v736 = vpack.c.b16 %v616, %v612
  %v737 = vpack.c.b16 %v617, %v613
  %v738 = vpack.c.b16 %v618, %v614
  %v739 = vpack.c.b16 %v619, %v615
  %v740 = vpack.c.b16 %v624, %v620
  %v741 = vpack.c.b16 %v625, %v621
  %v742 = vpack.c.b16 %v626, %v622
  %v743 = vpack.c.b16 %v627, %v623
  %v744 = vpack.c.b16 %v632, %v628
  %v745 = vpack.c.b16 %v633, %v629
  %v746 = vpack.c.b16 %v634, %v630
  %v747 = vpack.c.b16 %v635, %v631
  %v748 = vpack.c.b16 %v640, %v636
  %v749 = vpack.c.b16 %v641, %v637
  %v750 = vpack.c.b16 %v642, %v638
  %v751 = vpack.c.b16 %v643, %v639
  %v752 = vpack.c.b16 %v648, %v644
  %v753 = vpack.c.b16 %v649, %v645
  %v754 = vpack.c.b16 %v650, %v646
  %v755 = vpack.c.b16 %v651, %v647
  %v756 = vpack.c.b16 %v656, %v652
  %v757 = vpack.c.b16 %v657, %v653
  %v758 = vpack.c.b16 %v658, %v654
  %v759 = vpack.c.b16 %v659, %v655
  %v760 = vpack.c.b16 %v664, %v660
  %v761 = vpack.c.b16 %v665, %v661
  %v762 = vpack.c.b16 %v666, %v662
  %v763 = vpack.c.b16 %v667, %v663
  %860 = vmatpush.bf16.msra.mxu0 %v696
  %861 = vmatpush.bf16.msra.mxu0 %v692
  %862 = vmatpush.bf16.msra.mxu0 %v688
  %863 = vmatpush.bf16.msra.mxu0 %v684
  %864 = vmatpush.bf16.msra.mxu0 %v680
  %865 = vmatpush.bf16.msra.mxu0 %v676
  %866 = vmatpush.bf16.msra.mxu0 %v672
  %867 = vmatpush.bf16.msra.mxu0 %v668
  %868 = vmatmul.bf16.gmra.mxu0 %v332
  %v869 = vpop.f32.mrf.mxu0
  %v870 = vadd.f32 %v175, %v869
  %v871 = vpop.f32.mrf.mxu0
  %v872 = vadd.f32 %v180, %v871
  %873 = vmatmul.bf16.gmra.mxu0 %v335
  %v874 = vpop.f32.mrf.mxu0
  %v875 = vadd.f32 %v185, %v874
  %v876 = vpop.f32.mrf.mxu0
  %v877 = vadd.f32 %v190, %v876
  %878 = vmatmul.bf16.gmra.mxu0 %v338
  %v879 = vpop.f32.mrf.mxu0
  %v880 = vadd.f32 %v195, %v879
  %v881 = vpop.f32.mrf.mxu0
  %v882 = vadd.f32 %v200, %v881
  %883 = vmatmul.bf16.gmra.mxu0 %v341
  %v884 = vpop.f32.mrf.mxu0
  %v885 = vadd.f32 %v205, %v884
  %v886 = vpop.f32.mrf.mxu0
  %v887 = vadd.f32 %v210, %v886
  %888 = vmatmul.bf16.gmra.mxu0 %v344
  %v889 = vpop.f32.mrf.mxu0
  %v890 = vadd.f32 %v215, %v889
  %v891 = vpop.f32.mrf.mxu0
  %v892 = vadd.f32 %v220, %v891
  %893 = vmatmul.bf16.gmra.mxu0 %v347
  %v894 = vpop.f32.mrf.mxu0
  %v895 = vadd.f32 %v225, %v894
  %v896 = vpop.f32.mrf.mxu0
  %v897 = vadd.f32 %v230, %v896
  %898 = vmatmul.bf16.gmra.mxu0 %v350
  %v899 = vpop.f32.mrf.mxu0
  %v900 = vadd.f32 %v235, %v899
  %v901 = vpop.f32.mrf.mxu0
  %v902 = vadd.f32 %v240, %v901
  %903 = vmatmul.bf16.gmra.mxu0 %v353
  %v904 = vpop.f32.mrf.mxu0
  %v905 = vadd.f32 %v245, %v904
  %v906 = vpop.f32.mrf.mxu0
  %v907 = vadd.f32 %v250, %v906
  %908 = vdwg.mxu0
  %909 = vmatpush.bf16.msra.mxu0 %v728
  %910 = vmatpush.bf16.msra.mxu0 %v724
  %911 = vmatpush.bf16.msra.mxu0 %v720
  %912 = vmatpush.bf16.msra.mxu0 %v716
  %913 = vmatpush.bf16.msra.mxu0 %v712
  %914 = vmatpush.bf16.msra.mxu0 %v708
  %915 = vmatpush.bf16.msra.mxu0 %v704
  %916 = vmatpush.bf16.msra.mxu0 %v700
  %917 = vmatmul.bf16.gmra.mxu0 %v333
  %v918 = vpop.f32.mrf.mxu0
  %v919 = vadd.f32 %v870, %v918
  %v920 = vpop.f32.mrf.mxu0
  %v921 = vadd.f32 %v872, %v920
  %922 = vmatmul.bf16.gmra.mxu0 %v336
  %v923 = vpop.f32.mrf.mxu0
  %v924 = vadd.f32 %v875, %v923
  %v925 = vpop.f32.mrf.mxu0
  %v926 = vadd.f32 %v877, %v925
  %927 = vmatmul.bf16.gmra.mxu0 %v339
  %v928 = vpop.f32.mrf.mxu0
  %v929 = vadd.f32 %v880, %v928
  %v930 = vpop.f32.mrf.mxu0
  %v931 = vadd.f32 %v882, %v930
  %932 = vmatmul.bf16.gmra.mxu0 %v342
  %v933 = vpop.f32.mrf.mxu0
  %v934 = vadd.f32 %v885, %v933
  %v935 = vpop.f32.mrf.mxu0
  %v936 = vadd.f32 %v887, %v935
  %937 = vmatmul.bf16.gmra.mxu0 %v345
  %v938 = vpop.f32.mrf.mxu0
  %v939 = vadd.f32 %v890, %v938
  %v940 = vpop.f32.mrf.mxu0
  %v941 = vadd.f32 %v892, %v940
  %942 = vmatmul.bf16.gmra.mxu0 %v348
  %v943 = vpop.f32.mrf.mxu0
  %v944 = vadd.f32 %v895, %v943
  %v945 = vpop.f32.mrf.mxu0
  %v946 = vadd.f32 %v897, %v945
  %947 = vmatmul.bf16.gmra.mxu0 %v351
  %v948 = vpop.f32.mrf.mxu0
  %v949 = vadd.f32 %v900, %v948
  %v950 = vpop.f32.mrf.mxu0
  %v951 = vadd.f32 %v902, %v950
  %952 = vmatmul.bf16.gmra.mxu0 %v354
  %v953 = vpop.f32.mrf.mxu0
  %v954 = vadd.f32 %v905, %v953
  %v955 = vpop.f32.mrf.mxu0
  %v956 = vadd.f32 %v907, %v955
  %957 = vdwg.mxu0
  %958 = vmatpush.bf16.msra.mxu0 %v760
  %959 = vmatpush.bf16.msra.mxu0 %v756
  %960 = vmatpush.bf16.msra.mxu0 %v752
  %961 = vmatpush.bf16.msra.mxu0 %v748
  %962 = vmatpush.bf16.msra.mxu0 %v744
  %963 = vmatpush.bf16.msra.mxu0 %v740
  %964 = vmatpush.bf16.msra.mxu0 %v736
  %965 = vmatpush.bf16.msra.mxu0 %v732
  %966 = vmatmul.bf16.gmra.mxu0 %v334
  %v967 = vpop.f32.mrf.mxu0
  %v968 = vadd.f32 %v919, %v967
  %v969 = vpop.f32.mrf.mxu0
  %v970 = vadd.f32 %v921, %v969
  %971 = vmatmul.bf16.gmra.mxu0 %v337
  %v972 = vpop.f32.mrf.mxu0
  %v973 = vadd.f32 %v924, %v972
  %v974 = vpop.f32.mrf.mxu0
  %v975 = vadd.f32 %v926, %v974
  %976 = vmatmul.bf16.gmra.mxu0 %v340
  %v977 = vpop.f32.mrf.mxu0
  %v978 = vadd.f32 %v929, %v977
  %v979 = vpop.f32.mrf.mxu0
  %v980 = vadd.f32 %v931, %v979
  %981 = vmatmul.bf16.gmra.mxu0 %v343
  %v982 = vpop.f32.mrf.mxu0
  %v983 = vadd.f32 %v934, %v982
  %v984 = vpop.f32.mrf.mxu0
  %v985 = vadd.f32 %v936, %v984
  %986 = vmatmul.bf16.gmra.mxu0 %v346
  %v987 = vpop.f32.mrf.mxu0
  %v988 = vadd.f32 %v939, %v987
  %v989 = vpop.f32.mrf.mxu0
  %v990 = vadd.f32 %v941, %v989
  %991 = vmatmul.bf16.gmra.mxu0 %v349
  %v992 = vpop.f32.mrf.mxu0
  %v993 = vadd.f32 %v944, %v992
  %v994 = vpop.f32.mrf.mxu0
  %v995 = vadd.f32 %v946, %v994
  %996 = vmatmul.bf16.gmra.mxu0 %v352
  %v997 = vpop.f32.mrf.mxu0
  %v998 = vadd.f32 %v949, %v997
  %v999 = vpop.f32.mrf.mxu0
  %v1000 = vadd.f32 %v951, %v999
  %1001 = vmatmul.bf16.gmra.mxu0 %v355
  %v1002 = vpop.f32.mrf.mxu0
  %v1003 = vadd.f32 %v954, %v1002
  %v1004 = vpop.f32.mrf.mxu0
  %v1005 = vadd.f32 %v956, %v1004
  %1006 = vdwg.mxu0
  %1007 = vmatpush.bf16.msra.mxu0 %v697
  %1008 = vmatpush.bf16.msra.mxu0 %v693
  %1009 = vmatpush.bf16.msra.mxu0 %v689
  %1010 = vmatpush.bf16.msra.mxu0 %v685
  %1011 = vmatpush.bf16.msra.mxu0 %v681
  %1012 = vmatpush.bf16.msra.mxu0 %v677
  %1013 = vmatpush.bf16.msra.mxu0 %v673
  %1014 = vmatpush.bf16.msra.mxu0 %v669
  %1015 = vmatmul.bf16.gmra.mxu0 %v332
  %v1016 = vpop.f32.mrf.mxu0
  %v1017 = vadd.f32 %v175, %v1016
  %v1018 = vpop.f32.mrf.mxu0
  %v1019 = vadd.f32 %v180, %v1018
  %1020 = vmatmul.bf16.gmra.mxu0 %v335
  %v1021 = vpop.f32.mrf.mxu0
  %v1022 = vadd.f32 %v185, %v1021
  %v1023 = vpop.f32.mrf.mxu0
  %v1024 = vadd.f32 %v190, %v1023
  %1025 = vmatmul.bf16.gmra.mxu0 %v338
  %v1026 = vpop.f32.mrf.mxu0
  %v1027 = vadd.f32 %v195, %v1026
  %v1028 = vpop.f32.mrf.mxu0
  %v1029 = vadd.f32 %v200, %v1028
  %1030 = vmatmul.bf16.gmra.mxu0 %v341
  %v1031 = vpop.f32.mrf.mxu0
  %v1032 = vadd.f32 %v205, %v1031
  %v1033 = vpop.f32.mrf.mxu0
  %v1034 = vadd.f32 %v210, %v1033
  %1035 = vmatmul.bf16.gmra.mxu0 %v344
  %v1036 = vpop.f32.mrf.mxu0
  %v1037 = vadd.f32 %v215, %v1036
  %v1038 = vpop.f32.mrf.mxu0
  %v1039 = vadd.f32 %v220, %v1038
  %1040 = vmatmul.bf16.gmra.mxu0 %v347
  %v1041 = vpop.f32.mrf.mxu0
  %v1042 = vadd.f32 %v225, %v1041
  %v1043 = vpop.f32.mrf.mxu0
  %v1044 = vadd.f32 %v230, %v1043
  %1045 = vmatmul.bf16.gmra.mxu0 %v350
  %v1046 = vpop.f32.mrf.mxu0
  %v1047 = vadd.f32 %v235, %v1046
  %v1048 = vpop.f32.mrf.mxu0
  %v1049 = vadd.f32 %v240, %v1048
  %1050 = vmatmul.bf16.gmra.mxu0 %v353
  %v1051 = vpop.f32.mrf.mxu0
  %v1052 = vadd.f32 %v245, %v1051
  %v1053 = vpop.f32.mrf.mxu0
  %v1054 = vadd.f32 %v250, %v1053
  %1055 = vdwg.mxu0
  %1056 = vmatpush.bf16.msra.mxu0 %v729
  %1057 = vmatpush.bf16.msra.mxu0 %v725
  %1058 = vmatpush.bf16.msra.mxu0 %v721
  %1059 = vmatpush.bf16.msra.mxu0 %v717
  %1060 = vmatpush.bf16.msra.mxu0 %v713
  %1061 = vmatpush.bf16.msra.mxu0 %v709
  %1062 = vmatpush.bf16.msra.mxu0 %v705
  %1063 = vmatpush.bf16.msra.mxu0 %v701
  %1064 = vmatmul.bf16.gmra.mxu0 %v333
  %v1065 = vpop.f32.mrf.mxu0
  %v1066 = vadd.f32 %v1017, %v1065
  %v1067 = vpop.f32.mrf.mxu0
  %v1068 = vadd.f32 %v1019, %v1067
  %1069 = vmatmul.bf16.gmra.mxu0 %v336
  %v1070 = vpop.f32.mrf.mxu0
  %v1071 = vadd.f32 %v1022, %v1070
  %v1072 = vpop.f32.mrf.mxu0
  %v1073 = vadd.f32 %v1024, %v1072
  %1074 = vmatmul.bf16.gmra.mxu0 %v339
  %v1075 = vpop.f32.mrf.mxu0
  %v1076 = vadd.f32 %v1027, %v1075
  %v1077 = vpop.f32.mrf.mxu0
  %v1078 = vadd.f32 %v1029, %v1077
  %1079 = vmatmul.bf16.gmra.mxu0 %v342
  %v1080 = vpop.f32.mrf.mxu0
  %v1081 = vadd.f32 %v1032, %v1080
  %v1082 = vpop.f32.mrf.mxu0
  %v1083 = vadd.f32 %v1034, %v1082
  %1084 = vmatmul.bf16.gmra.mxu0 %v345
  %v1085 = vpop.f32.mrf.mxu0
  %v1086 = vadd.f32 %v1037, %v1085
  %v1087 = vpop.f32.mrf.mxu0
  %v1088 = vadd.f32 %v1039, %v1087
  %1089 = vmatmul.bf16.gmra.mxu0 %v348
  %v1090 = vpop.f32.mrf.mxu0
  %v1091 = vadd.f32 %v1042, %v1090
  %v1092 = vpop.f32.mrf.mxu0
  %v1093 = vadd.f32 %v1044, %v1092
  %1094 = vmatmul.bf16.gmra.mxu0 %v351
  %v1095 = vpop.f32.mrf.mxu0
  %v1096 = vadd.f32 %v1047, %v1095
  %v1097 = vpop.f32.mrf.mxu0
  %v1098 = vadd.f32 %v1049, %v1097
  %1099 = vmatmul.bf16.gmra.mxu0 %v354
  %v1100 = vpop.f32.mrf.mxu0
  %v1101 = vadd.f32 %v1052, %v1100
  %v1102 = vpop.f32.mrf.mxu0
  %v1103 = vadd.f32 %v1054, %v1102
  %1104 = vdwg.mxu0
  %1105 = vmatpush.bf16.msra.mxu0 %v761
  %1106 = vmatpush.bf16.msra.mxu0 %v757
  %1107 = vmatpush.bf16.msra.mxu0 %v753
  %1108 = vmatpush.bf16.msra.mxu0 %v749
  %1109 = vmatpush.bf16.msra.mxu0 %v745
  %1110 = vmatpush.bf16.msra.mxu0 %v741
  %1111 = vmatpush.bf16.msra.mxu0 %v737
  %1112 = vmatpush.bf16.msra.mxu0 %v733
  %1113 = vmatmul.bf16.gmra.mxu0 %v334
  %v1114 = vpop.f32.mrf.mxu0
  %v1115 = vadd.f32 %v1066, %v1114
  %v1116 = vpop.f32.mrf.mxu0
  %v1117 = vadd.f32 %v1068, %v1116
  %1118 = vmatmul.bf16.gmra.mxu0 %v337
  %v1119 = vpop.f32.mrf.mxu0
  %v1120 = vadd.f32 %v1071, %v1119
  %v1121 = vpop.f32.mrf.mxu0
  %v1122 = vadd.f32 %v1073, %v1121
  %1123 = vmatmul.bf16.gmra.mxu0 %v340
  %v1124 = vpop.f32.mrf.mxu0
  %v1125 = vadd.f32 %v1076, %v1124
  %v1126 = vpop.f32.mrf.mxu0
  %v1127 = vadd.f32 %v1078, %v1126
  %1128 = vmatmul.bf16.gmra.mxu0 %v343
  %v1129 = vpop.f32.mrf.mxu0
  %v1130 = vadd.f32 %v1081, %v1129
  %v1131 = vpop.f32.mrf.mxu0
  %v1132 = vadd.f32 %v1083, %v1131
  %1133 = vmatmul.bf16.gmra.mxu0 %v346
  %v1134 = vpop.f32.mrf.mxu0
  %v1135 = vadd.f32 %v1086, %v1134
  %v1136 = vpop.f32.mrf.mxu0
  %v1137 = vadd.f32 %v1088, %v1136
  %1138 = vmatmul.bf16.gmra.mxu0 %v349
  %v1139 = vpop.f32.mrf.mxu0
  %v1140 = vadd.f32 %v1091, %v1139
  %v1141 = vpop.f32.mrf.mxu0
  %v1142 = vadd.f32 %v1093, %v1141
  %1143 = vmatmul.bf16.gmra.mxu0 %v352
  %v1144 = vpop.f32.mrf.mxu0
  %v1145 = vadd.f32 %v1096, %v1144
  %v1146 = vpop.f32.mrf.mxu0
  %v1147 = vadd.f32 %v1098, %v1146
  %1148 = vmatmul.bf16.gmra.mxu0 %v355
  %v1149 = vpop.f32.mrf.mxu0
  %v1150 = vadd.f32 %v1101, %v1149
  %v1151 = vpop.f32.mrf.mxu0
  %v1152 = vadd.f32 %v1103, %v1151
  %1153 = vdwg.mxu0
  %1154 = vmatpush.bf16.msra.mxu0 %v698
  %1155 = vmatpush.bf16.msra.mxu0 %v694
  %1156 = vmatpush.bf16.msra.mxu0 %v690
  %1157 = vmatpush.bf16.msra.mxu0 %v686
  %1158 = vmatpush.bf16.msra.mxu0 %v682
  %1159 = vmatpush.bf16.msra.mxu0 %v678
  %1160 = vmatpush.bf16.msra.mxu0 %v674
  %1161 = vmatpush.bf16.msra.mxu0 %v670
  %1162 = vmatmul.bf16.gmra.mxu0 %v332
  %v1163 = vpop.f32.mrf.mxu0
  %v1164 = vadd.f32 %v175, %v1163
  %v1165 = vpop.f32.mrf.mxu0
  %v1166 = vadd.f32 %v180, %v1165
  %1167 = vmatmul.bf16.gmra.mxu0 %v335
  %v1168 = vpop.f32.mrf.mxu0
  %v1169 = vadd.f32 %v185, %v1168
  %v1170 = vpop.f32.mrf.mxu0
  %v1171 = vadd.f32 %v190, %v1170
  %1172 = vmatmul.bf16.gmra.mxu0 %v338
  %v1173 = vpop.f32.mrf.mxu0
  %v1174 = vadd.f32 %v195, %v1173
  %v1175 = vpop.f32.mrf.mxu0
  %v1176 = vadd.f32 %v200, %v1175
  %1177 = vmatmul.bf16.gmra.mxu0 %v341
  %v1178 = vpop.f32.mrf.mxu0
  %v1179 = vadd.f32 %v205, %v1178
  %v1180 = vpop.f32.mrf.mxu0
  %v1181 = vadd.f32 %v210, %v1180
  %1182 = vmatmul.bf16.gmra.mxu0 %v344
  %v1183 = vpop.f32.mrf.mxu0
  %v1184 = vadd.f32 %v215, %v1183
  %v1185 = vpop.f32.mrf.mxu0
  %v1186 = vadd.f32 %v220, %v1185
  %1187 = vmatmul.bf16.gmra.mxu0 %v347
  %v1188 = vpop.f32.mrf.mxu0
  %v1189 = vadd.f32 %v225, %v1188
  %v1190 = vpop.f32.mrf.mxu0
  %v1191 = vadd.f32 %v230, %v1190
  %1192 = vmatmul.bf16.gmra.mxu0 %v350
  %v1193 = vpop.f32.mrf.mxu0
  %v1194 = vadd.f32 %v235, %v1193
  %v1195 = vpop.f32.mrf.mxu0
  %v1196 = vadd.f32 %v240, %v1195
  %1197 = vmatmul.bf16.gmra.mxu0 %v353
  %v1198 = vpop.f32.mrf.mxu0
  %v1199 = vadd.f32 %v245, %v1198
  %v1200 = vpop.f32.mrf.mxu0
  %v1201 = vadd.f32 %v250, %v1200
  %1202 = vdwg.mxu0
  %1203 = vmatpush.bf16.msra.mxu0 %v730
  %1204 = vmatpush.bf16.msra.mxu0 %v726
  %1205 = vmatpush.bf16.msra.mxu0 %v722
  %1206 = vmatpush.bf16.msra.mxu0 %v718
  %1207 = vmatpush.bf16.msra.mxu0 %v714
  %1208 = vmatpush.bf16.msra.mxu0 %v710
  %1209 = vmatpush.bf16.msra.mxu0 %v706
  %1210 = vmatpush.bf16.msra.mxu0 %v702
  %1211 = vmatmul.bf16.gmra.mxu0 %v333
  %v1212 = vpop.f32.mrf.mxu0
  %v1213 = vadd.f32 %v1164, %v1212
  %v1214 = vpop.f32.mrf.mxu0
  %v1215 = vadd.f32 %v1166, %v1214
  %1216 = vmatmul.bf16.gmra.mxu0 %v336
  %v1217 = vpop.f32.mrf.mxu0
  %v1218 = vadd.f32 %v1169, %v1217
  %v1219 = vpop.f32.mrf.mxu0
  %v1220 = vadd.f32 %v1171, %v1219
  %1221 = vmatmul.bf16.gmra.mxu0 %v339
  %v1222 = vpop.f32.mrf.mxu0
  %v1223 = vadd.f32 %v1174, %v1222
  %v1224 = vpop.f32.mrf.mxu0
  %v1225 = vadd.f32 %v1176, %v1224
  %1226 = vmatmul.bf16.gmra.mxu0 %v342
  %v1227 = vpop.f32.mrf.mxu0
  %v1228 = vadd.f32 %v1179, %v1227
  %v1229 = vpop.f32.mrf.mxu0
  %v1230 = vadd.f32 %v1181, %v1229
  %1231 = vmatmul.bf16.gmra.mxu0 %v345
  %v1232 = vpop.f32.mrf.mxu0
  %v1233 = vadd.f32 %v1184, %v1232
  %v1234 = vpop.f32.mrf.mxu0
  %v1235 = vadd.f32 %v1186, %v1234
  %1236 = vmatmul.bf16.gmra.mxu0 %v348
  %v1237 = vpop.f32.mrf.mxu0
  %v1238 = vadd.f32 %v1189, %v1237
  %v1239 = vpop.f32.mrf.mxu0
  %v1240 = vadd.f32 %v1191, %v1239
  %1241 = vmatmul.bf16.gmra.mxu0 %v351
  %v1242 = vpop.f32.mrf.mxu0
  %v1243 = vadd.f32 %v1194, %v1242
  %v1244 = vpop.f32.mrf.mxu0
  %v1245 = vadd.f32 %v1196, %v1244
  %1246 = vmatmul.bf16.gmra.mxu0 %v354
  %v1247 = vpop.f32.mrf.mxu0
  %v1248 = vadd.f32 %v1199, %v1247
  %v1249 = vpop.f32.mrf.mxu0
  %v1250 = vadd.f32 %v1201, %v1249
  %1251 = vdwg.mxu0
  %1252 = vmatpush.bf16.msra.mxu0 %v762
  %1253 = vmatpush.bf16.msra.mxu0 %v758
  %1254 = vmatpush.bf16.msra.mxu0 %v754
  %1255 = vmatpush.bf16.msra.mxu0 %v750
  %1256 = vmatpush.bf16.msra.mxu0 %v746
  %1257 = vmatpush.bf16.msra.mxu0 %v742
  %1258 = vmatpush.bf16.msra.mxu0 %v738
  %1259 = vmatpush.bf16.msra.mxu0 %v734
  %1260 = vmatmul.bf16.gmra.mxu0 %v334
  %v1261 = vpop.f32.mrf.mxu0
  %v1262 = vadd.f32 %v1213, %v1261
  %v1263 = vpop.f32.mrf.mxu0
  %v1264 = vadd.f32 %v1215, %v1263
  %1265 = vmatmul.bf16.gmra.mxu0 %v337
  %v1266 = vpop.f32.mrf.mxu0
  %v1267 = vadd.f32 %v1218, %v1266
  %v1268 = vpop.f32.mrf.mxu0
  %v1269 = vadd.f32 %v1220, %v1268
  %1270 = vmatmul.bf16.gmra.mxu0 %v340
  %v1271 = vpop.f32.mrf.mxu0
  %v1272 = vadd.f32 %v1223, %v1271
  %v1273 = vpop.f32.mrf.mxu0
  %v1274 = vadd.f32 %v1225, %v1273
  %1275 = vmatmul.bf16.gmra.mxu0 %v343
  %v1276 = vpop.f32.mrf.mxu0
  %v1277 = vadd.f32 %v1228, %v1276
  %v1278 = vpop.f32.mrf.mxu0
  %v1279 = vadd.f32 %v1230, %v1278
  %1280 = vmatmul.bf16.gmra.mxu0 %v346
  %v1281 = vpop.f32.mrf.mxu0
  %v1282 = vadd.f32 %v1233, %v1281
  %v1283 = vpop.f32.mrf.mxu0
  %v1284 = vadd.f32 %v1235, %v1283
  %1285 = vmatmul.bf16.gmra.mxu0 %v349
  %v1286 = vpop.f32.mrf.mxu0
  %v1287 = vadd.f32 %v1238, %v1286
  %v1288 = vpop.f32.mrf.mxu0
  %v1289 = vadd.f32 %v1240, %v1288
  %1290 = vmatmul.bf16.gmra.mxu0 %v352
  %v1291 = vpop.f32.mrf.mxu0
  %v1292 = vadd.f32 %v1243, %v1291
  %v1293 = vpop.f32.mrf.mxu0
  %v1294 = vadd.f32 %v1245, %v1293
  %1295 = vmatmul.bf16.gmra.mxu0 %v355
  %v1296 = vpop.f32.mrf.mxu0
  %v1297 = vadd.f32 %v1248, %v1296
  %v1298 = vpop.f32.mrf.mxu0
  %v1299 = vadd.f32 %v1250, %v1298
  %1300 = vdwg.mxu0
  %1301 = vmatpush.bf16.msra.mxu0 %v699
  %1302 = vmatpush.bf16.msra.mxu0 %v695
  %1303 = vmatpush.bf16.msra.mxu0 %v691
  %1304 = vmatpush.bf16.msra.mxu0 %v687
  %1305 = vmatpush.bf16.msra.mxu0 %v683
  %1306 = vmatpush.bf16.msra.mxu0 %v679
  %1307 = vmatpush.bf16.msra.mxu0 %v675
  %1308 = vmatpush.bf16.msra.mxu0 %v671
  %1309 = vmatmul.bf16.gmra.mxu0 %v332
  %v1310 = vpop.f32.mrf.mxu0
  %v1311 = vadd.f32 %v175, %v1310
  %v1312 = vpop.f32.mrf.mxu0
  %v1313 = vadd.f32 %v180, %v1312
  %1314 = vmatmul.bf16.gmra.mxu0 %v335
  %v1315 = vpop.f32.mrf.mxu0
  %v1316 = vadd.f32 %v185, %v1315
  %v1317 = vpop.f32.mrf.mxu0
  %v1318 = vadd.f32 %v190, %v1317
  %1319 = vmatmul.bf16.gmra.mxu0 %v338
  %v1320 = vpop.f32.mrf.mxu0
  %v1321 = vadd.f32 %v195, %v1320
  %v1322 = vpop.f32.mrf.mxu0
  %v1323 = vadd.f32 %v200, %v1322
  %1324 = vmatmul.bf16.gmra.mxu0 %v341
  %v1325 = vpop.f32.mrf.mxu0
  %v1326 = vadd.f32 %v205, %v1325
  %v1327 = vpop.f32.mrf.mxu0
  %v1328 = vadd.f32 %v210, %v1327
  %1329 = vmatmul.bf16.gmra.mxu0 %v344
  %v1330 = vpop.f32.mrf.mxu0
  %v1331 = vadd.f32 %v215, %v1330
  %v1332 = vpop.f32.mrf.mxu0
  %v1333 = vadd.f32 %v220, %v1332
  %1334 = vmatmul.bf16.gmra.mxu0 %v347
  %v1335 = vpop.f32.mrf.mxu0
  %v1336 = vadd.f32 %v225, %v1335
  %v1337 = vpop.f32.mrf.mxu0
  %v1338 = vadd.f32 %v230, %v1337
  %1339 = vmatmul.bf16.gmra.mxu0 %v350
  %v1340 = vpop.f32.mrf.mxu0
  %v1341 = vadd.f32 %v235, %v1340
  %v1342 = vpop.f32.mrf.mxu0
  %v1343 = vadd.f32 %v240, %v1342
  %1344 = vmatmul.bf16.gmra.mxu0 %v353
  %v1345 = vpop.f32.mrf.mxu0
  %v1346 = vadd.f32 %v245, %v1345
  %v1347 = vpop.f32.mrf.mxu0
  %v1348 = vadd.f32 %v250, %v1347
  %1349 = vdwg.mxu0
  %1350 = vmatpush.bf16.msra.mxu0 %v731
  %1351 = vmatpush.bf16.msra.mxu0 %v727
  %1352 = vmatpush.bf16.msra.mxu0 %v723
  %1353 = vmatpush.bf16.msra.mxu0 %v719
  %1354 = vmatpush.bf16.msra.mxu0 %v715
  %1355 = vmatpush.bf16.msra.mxu0 %v711
  %1356 = vmatpush.bf16.msra.mxu0 %v707
  %1357 = vmatpush.bf16.msra.mxu0 %v703
  %1358 = vmatmul.bf16.gmra.mxu0 %v333
  %v1359 = vpop.f32.mrf.mxu0
  %v1360 = vadd.f32 %v1311, %v1359
  %v1361 = vpop.f32.mrf.mxu0
  %v1362 = vadd.f32 %v1313, %v1361
  %1363 = vmatmul.bf16.gmra.mxu0 %v336
  %v1364 = vpop.f32.mrf.mxu0
  %v1365 = vadd.f32 %v1316, %v1364
  %v1366 = vpop.f32.mrf.mxu0
  %v1367 = vadd.f32 %v1318, %v1366
  %1368 = vmatmul.bf16.gmra.mxu0 %v339
  %v1369 = vpop.f32.mrf.mxu0
  %v1370 = vadd.f32 %v1321, %v1369
  %v1371 = vpop.f32.mrf.mxu0
  %v1372 = vadd.f32 %v1323, %v1371
  %1373 = vmatmul.bf16.gmra.mxu0 %v342
  %v1374 = vpop.f32.mrf.mxu0
  %v1375 = vadd.f32 %v1326, %v1374
  %v1376 = vpop.f32.mrf.mxu0
  %v1377 = vadd.f32 %v1328, %v1376
  %1378 = vmatmul.bf16.gmra.mxu0 %v345
  %v1379 = vpop.f32.mrf.mxu0
  %v1380 = vadd.f32 %v1331, %v1379
  %v1381 = vpop.f32.mrf.mxu0
  %v1382 = vadd.f32 %v1333, %v1381
  %1383 = vmatmul.bf16.gmra.mxu0 %v348
  %v1384 = vpop.f32.mrf.mxu0
  %v1385 = vadd.f32 %v1336, %v1384
  %v1386 = vpop.f32.mrf.mxu0
  %v1387 = vadd.f32 %v1338, %v1386
  %1388 = vmatmul.bf16.gmra.mxu0 %v351
  %v1389 = vpop.f32.mrf.mxu0
  %v1390 = vadd.f32 %v1341, %v1389
  %v1391 = vpop.f32.mrf.mxu0
  %v1392 = vadd.f32 %v1343, %v1391
  %1393 = vmatmul.bf16.gmra.mxu0 %v354
  %v1394 = vpop.f32.mrf.mxu0
  %v1395 = vadd.f32 %v1346, %v1394
  %v1396 = vpop.f32.mrf.mxu0
  %v1397 = vadd.f32 %v1348, %v1396
  %1398 = vdwg.mxu0
  %1399 = vmatpush.bf16.msra.mxu0 %v763
  %1400 = vmatpush.bf16.msra.mxu0 %v759
  %1401 = vmatpush.bf16.msra.mxu0 %v755
  %1402 = vmatpush.bf16.msra.mxu0 %v751
  %1403 = vmatpush.bf16.msra.mxu0 %v747
  %1404 = vmatpush.bf16.msra.mxu0 %v743
  %1405 = vmatpush.bf16.msra.mxu0 %v739
  %1406 = vmatpush.bf16.msra.mxu0 %v735
  %1407 = vmatmul.bf16.gmra.mxu0 %v334
  %v1408 = vpop.f32.mrf.mxu0
  %v1409 = vadd.f32 %v1360, %v1408
  %v1410 = vpop.f32.mrf.mxu0
  %v1411 = vadd.f32 %v1362, %v1410
  %1412 = vmatmul.bf16.gmra.mxu0 %v337
  %v1413 = vpop.f32.mrf.mxu0
  %v1414 = vadd.f32 %v1365, %v1413
  %v1415 = vpop.f32.mrf.mxu0
  %v1416 = vadd.f32 %v1367, %v1415
  %1417 = vmatmul.bf16.gmra.mxu0 %v340
  %v1418 = vpop.f32.mrf.mxu0
  %v1419 = vadd.f32 %v1370, %v1418
  %v1420 = vpop.f32.mrf.mxu0
  %v1421 = vadd.f32 %v1372, %v1420
  %1422 = vmatmul.bf16.gmra.mxu0 %v343
  %v1423 = vpop.f32.mrf.mxu0
  %v1424 = vadd.f32 %v1375, %v1423
  %v1425 = vpop.f32.mrf.mxu0
  %v1426 = vadd.f32 %v1377, %v1425
  %1427 = vmatmul.bf16.gmra.mxu0 %v346
  %v1428 = vpop.f32.mrf.mxu0
  %v1429 = vadd.f32 %v1380, %v1428
  %v1430 = vpop.f32.mrf.mxu0
  %v1431 = vadd.f32 %v1382, %v1430
  %1432 = vmatmul.bf16.gmra.mxu0 %v349
  %v1433 = vpop.f32.mrf.mxu0
  %v1434 = vadd.f32 %v1385, %v1433
  %v1435 = vpop.f32.mrf.mxu0
  %v1436 = vadd.f32 %v1387, %v1435
  %1437 = vmatmul.bf16.gmra.mxu0 %v352
  %v1438 = vpop.f32.mrf.mxu0
  %v1439 = vadd.f32 %v1390, %v1438
  %v1440 = vpop.f32.mrf.mxu0
  %v1441 = vadd.f32 %v1392, %v1440
  %1442 = vmatmul.bf16.gmra.mxu0 %v355
  %v1443 = vpop.f32.mrf.mxu0
  %v1444 = vadd.f32 %v1395, %v1443
  %v1445 = vpop.f32.mrf.mxu0
  %v1446 = vadd.f32 %v1397, %v1445
  %1447 = vdwg.mxu0
  %1448 = vst [vmem:[#allocation2] sm:$0xff] %v968
  %1449 = vst [vmem:[#allocation2 + $0x8] sm:$0xff] %v1115
  %1450 = vst [vmem:[#allocation2 + $0x10] sm:$0xff] %v1262
  %1451 = vst [vmem:[#allocation2 + $0x18] sm:$0xff] %v1409
  %1452 = vst [vmem:[#allocation2 + $0x20] sm:$0xff] %v970
  %1453 = vst [vmem:[#allocation2 + $0x28] sm:$0xff] %v1117
  %1454 = vst [vmem:[#allocation2 + $0x30] sm:$0xff] %v1264
  %1455 = vst [vmem:[#allocation2 + $0x38] sm:$0xff] %v1411
  %1456 = vst [vmem:[#allocation2 + $0x40] sm:$0xff] %v973
  %1457 = vst [vmem:[#allocation2 + $0x48] sm:$0xff] %v1120
  %1458 = vst [vmem:[#allocation2 + $0x50] sm:$0xff] %v1267
  %1459 = vst [vmem:[#allocation2 + $0x58] sm:$0xff] %v1414
  %1460 = vst [vmem:[#allocation2 + $0x60] sm:$0xff] %v975
  %1461 = vst [vmem:[#allocation2 + $0x68] sm:$0xff] %v1122
  %1462 = vst [vmem:[#allocation2 + $0x70] sm:$0xff] %v1269
  %1463 = vst [vmem:[#allocation2 + $0x78] sm:$0xff] %v1416
  %1464 = vst [vmem:[#allocation2 + $0x80] sm:$0xff] %v978
  %1465 = vst [vmem:[#allocation2 + $0x88] sm:$0xff] %v1125
  %1466 = vst [vmem:[#allocation2 + $0x90] sm:$0xff] %v1272
  %1467 = vst [vmem:[#allocation2 + $0x98] sm:$0xff] %v1419
  %1468 = vst [vmem:[#allocation2 + $0xa0] sm:$0xff] %v980
  %1469 = vst [vmem:[#allocation2 + $0xa8] sm:$0xff] %v1127
  %1470 = vst [vmem:[#allocation2 + $0xb0] sm:$0xff] %v1274
  %1471 = vst [vmem:[#allocation2 + $0xb8] sm:$0xff] %v1421
  %1472 = vst [vmem:[#allocation2 + $0xc0] sm:$0xff] %v983
  %1473 = vst [vmem:[#allocation2 + $0xc8] sm:$0xff] %v1130
  %1474 = vst [vmem:[#allocation2 + $0xd0] sm:$0xff] %v1277
  %1475 = vst [vmem:[#allocation2 + $0xd8] sm:$0xff] %v1424
  %1476 = vst [vmem:[#allocation2 + $0xe0] sm:$0xff] %v985
  %1477 = vst [vmem:[#allocation2 + $0xe8] sm:$0xff] %v1132
  %1478 = vst [vmem:[#allocation2 + $0xf0] sm:$0xff] %v1279
  %1479 = vst [vmem:[#allocation2 + $0xf8] sm:$0xff] %v1426
  %1480 = vst [vmem:[#allocation2 + $0x100] sm:$0xff] %v988
  %1481 = vst [vmem:[#allocation2 + $0x108] sm:$0xff] %v1135
  %1482 = vst [vmem:[#allocation2 + $0x110] sm:$0xff] %v1282
  %1483 = vst [vmem:[#allocation2 + $0x118] sm:$0xff] %v1429
  %1484 = vst [vmem:[#allocation2 + $0x120] sm:$0xff] %v990
  %1485 = vst [vmem:[#allocation2 + $0x128] sm:$0xff] %v1137
  %1486 = vst [vmem:[#allocation2 + $0x130] sm:$0xff] %v1284
  %1487 = vst [vmem:[#allocation2 + $0x138] sm:$0xff] %v1431
  %1488 = vst [vmem:[#allocation2 + $0x140] sm:$0xff] %v993
  %1489 = vst [vmem:[#allocation2 + $0x148] sm:$0xff] %v1140
  %1490 = vst [vmem:[#allocation2 + $0x150] sm:$0xff] %v1287
  %1491 = vst [vmem:[#allocation2 + $0x158] sm:$0xff] %v1434
  %1492 = vst [vmem:[#allocation2 + $0x160] sm:$0xff] %v995
  %1493 = vst [vmem:[#allocation2 + $0x168] sm:$0xff] %v1142
  %1494 = vst [vmem:[#allocation2 + $0x170] sm:$0xff] %v1289
  %1495 = vst [vmem:[#allocation2 + $0x178] sm:$0xff] %v1436
  %1496 = vst [vmem:[#allocation2 + $0x180] sm:$0xff] %v998
  %1497 = vst [vmem:[#allocation2 + $0x188] sm:$0xff] %v1145
  %1498 = vst [vmem:[#allocation2 + $0x190] sm:$0xff] %v1292
  %1499 = vst [vmem:[#allocation2 + $0x198] sm:$0xff] %v1439
  %1500 = vst [vmem:[#allocation2 + $0x1a0] sm:$0xff] %v1000
  %1501 = vst [vmem:[#allocation2 + $0x1a8] sm:$0xff] %v1147
  %1502 = vst [vmem:[#allocation2 + $0x1b0] sm:$0xff] %v1294
  %1503 = vst [vmem:[#allocation2 + $0x1b8] sm:$0xff] %v1441
  %1504 = vst [vmem:[#allocation2 + $0x1c0] sm:$0xff] %v1003
  %1505 = vst [vmem:[#allocation2 + $0x1c8] sm:$0xff] %v1150
  %1506 = vst [vmem:[#allocation2 + $0x1d0] sm:$0xff] %v1297
  %1507 = vst [vmem:[#allocation2 + $0x1d8] sm:$0xff] %v1444
  %1508 = vst [vmem:[#allocation2 + $0x1e0] sm:$0xff] %v1005
  %1509 = vst [vmem:[#allocation2 + $0x1e8] sm:$0xff] %v1152
  %1510 = vst [vmem:[#allocation2 + $0x1f0] sm:$0xff] %v1299
  %1511 = vst [vmem:[#allocation2 + $0x1f8] sm:$0xff] %v1446
  %v1512 = vld [vmem:[%s6] sm:$0xff]
  %v1513 = vld [vmem:[%s6 + $0x20] sm:$0xff]
  %v1514 = vld [vmem:[%s6 + $0x40] sm:$0xff]
  %v1515 = vld [vmem:[%s6 + $0x60] sm:$0xff]
  %v1516 = vld [vmem:[#allocation2] sm:$0xff]
  %v1517 = vld [vmem:[#allocation2 + $0x20] sm:$0xff]
  %v1518 = vld [vmem:[#allocation2 + $0x40] sm:$0xff]
  %v1519 = vld [vmem:[#allocation2 + $0x60] sm:$0xff]
  %v1520 = vld [vmem:[%s3] sm:$0xff]
  %v1521 = vld [vmem:[%s3 + $0x20] sm:$0xff]
  %v1522 = vld [vmem:[%s3 + $0x40] sm:$0xff]
  %v1523 = vld [vmem:[%s3 + $0x60] sm:$0xff]
  %v1524 = vmul.f32 %v1520, %v1512
  %v1525 = vmul.f32 %v1521, %v1513
  %v1526 = vmul.f32 %v1522, %v1514
  %v1527 = vmul.f32 %v1523, %v1515
  %v1528 = vadd.f32 %v1516, %v1524
  %v1529 = vadd.f32 %v1517, %v1525
  %v1530 = vadd.f32 %v1518, %v1526
  %v1531 = vadd.f32 %v1519, %v1527
  %v1532 = vmul.f32 %v1528, 0.5
  %v1533 = vmul.f32 %v1529, 0.5
  %v1534 = vmul.f32 %v1530, 0.5
  %v1535 = vmul.f32 %v1531, 0.5
  %v1536 = vtanh.pop %v1532
  %v1537 = vtanh.pop %v1533
  %v1538 = vtanh.pop %v1534
  %v1539 = vtanh.pop %v1535
  %v1540 = vmul.f32 %v1536, 0.5
  %v1541 = vmul.f32 %v1537, 0.5
  %v1542 = vmul.f32 %v1538, 0.5
  %v1543 = vmul.f32 %v1539, 0.5
  %v1544 = vadd.f32 %v1540, 0.5
  %v1545 = vadd.f32 %v1541, 0.5
  %v1546 = vadd.f32 %v1542, 0.5
  %v1547 = vadd.f32 %v1543, 0.5
  %v1548 = vld [vmem:[#allocation2 + $0x80] sm:$0xff]
  %v1549 = vld [vmem:[#allocation2 + $0xa0] sm:$0xff]
  %v1550 = vld [vmem:[#allocation2 + $0xc0] sm:$0xff]
  %v1551 = vld [vmem:[#allocation2 + $0xe0] sm:$0xff]
  %v1552 = vld [vmem:[%s4] sm:$0xff]
  %v1553 = vld [vmem:[%s4 + $0x20] sm:$0xff]
  %v1554 = vld [vmem:[%s4 + $0x40] sm:$0xff]
  %v1555 = vld [vmem:[%s4 + $0x60] sm:$0xff]
  %v1556 = vmul.f32 %v1552, %v1512
  %v1557 = vmul.f32 %v1553, %v1513
  %v1558 = vmul.f32 %v1554, %v1514
  %v1559 = vmul.f32 %v1555, %v1515
  %v1560 = vadd.f32 %v1548, %v1556
  %v1561 = vadd.f32 %v1549, %v1557
  %v1562 = vadd.f32 %v1550, %v1558
  %v1563 = vadd.f32 %v1551, %v1559
  %v1564 = vmul.f32 %v1560, 0.5
  %v1565 = vmul.f32 %v1561, 0.5
  %v1566 = vmul.f32 %v1562, 0.5
  %v1567 = vmul.f32 %v1563, 0.5
  %v1568 = vtanh.pop %v1564
  %v1569 = vtanh.pop %v1565
  %v1570 = vtanh.pop %v1566
  %v1571 = vtanh.pop %v1567
  %v1572 = vmul.f32 %v1568, 0.5
  %v1573 = vmul.f32 %v1569, 0.5
  %v1574 = vmul.f32 %v1570, 0.5
  %v1575 = vmul.f32 %v1571, 0.5
  %v1576 = vadd.f32 %v1572, 0.5
  %v1577 = vadd.f32 %v1573, 0.5
  %v1578 = vadd.f32 %v1574, 0.5
  %v1579 = vadd.f32 %v1575, 0.5
  %v1580 = vld [vmem:[#allocation2 + $0x100] sm:$0xff]
  %v1581 = vld [vmem:[#allocation2 + $0x120] sm:$0xff]
  %v1582 = vld [vmem:[#allocation2 + $0x140] sm:$0xff]
  %v1583 = vld [vmem:[#allocation2 + $0x160] sm:$0xff]
  %v1584 = vtanh.pop %v1580
  %v1585 = vtanh.pop %v1581
  %v1586 = vtanh.pop %v1582
  %v1587 = vtanh.pop %v1583
  %v1588 = vmul.f32 %v1576, %v1512
  %v1589 = vmul.f32 %v1577, %v1513
  %v1590 = vmul.f32 %v1578, %v1514
  %v1591 = vmul.f32 %v1579, %v1515
  %v1592 = vmul.f32 %v1544, %v1584
  %v1593 = vmul.f32 %v1545, %v1585
  %v1594 = vmul.f32 %v1546, %v1586
  %v1595 = vmul.f32 %v1547, %v1587
  %v1596 = vadd.f32 %v1588, %v1592
  %v1597 = vadd.f32 %v1589, %v1593
  %v1598 = vadd.f32 %v1590, %v1594
  %v1599 = vadd.f32 %v1591, %v1595
  %v1600 = vld [vmem:[#allocation2 + $0x180] sm:$0xff]
  %v1601 = vld [vmem:[#allocation2 + $0x1a0] sm:$0xff]
  %v1602 = vld [vmem:[#allocation2 + $0x1c0] sm:$0xff]
  %v1603 = vld [vmem:[#allocation2 + $0x1e0] sm:$0xff]
  %v1604 = vld [vmem:[%s5] sm:$0xff]
  %v1605 = vld [vmem:[%s5 + $0x20] sm:$0xff]
  %v1606 = vld [vmem:[%s5 + $0x40] sm:$0xff]
  %v1607 = vld [vmem:[%s5 + $0x60] sm:$0xff]
  %v1608 = vmul.f32 %v1604, %v1596
  %v1609 = vmul.f32 %v1605, %v1597
  %v1610 = vmul.f32 %v1606, %v1598
  %v1611 = vmul.f32 %v1607, %v1599
  %v1612 = vadd.f32 %v1600, %v1608
  %v1613 = vadd.f32 %v1601, %v1609
  %v1614 = vadd.f32 %v1602, %v1610
  %v1615 = vadd.f32 %v1603, %v1611
  %v1616 = vmul.f32 %v1612, 0.5
  %v1617 = vmul.f32 %v1613, 0.5
  %v1618 = vmul.f32 %v1614, 0.5
  %v1619 = vmul.f32 %v1615, 0.5
  %v1620 = vtanh.pop %v1616
  %v1621 = vtanh.pop %v1617
  %v1622 = vtanh.pop %v1618
  %v1623 = vtanh.pop %v1619
  %v1624 = vmul.f32 %v1620, 0.5
  %v1625 = vmul.f32 %v1621, 0.5
  %v1626 = vmul.f32 %v1622, 0.5
  %v1627 = vmul.f32 %v1623, 0.5
  %v1628 = vadd.f32 %v1624, 0.5
  %v1629 = vadd.f32 %v1625, 0.5
  %v1630 = vadd.f32 %v1626, 0.5
  %v1631 = vadd.f32 %v1627, 0.5
  %v1632 = vtanh.pop %v1596
  %v1633 = vtanh.pop %v1597
  %v1634 = vtanh.pop %v1598
  %v1635 = vtanh.pop %v1599
  %v1636 = vmul.f32 %v1628, %v1632
  %v1637 = vmul.f32 %v1629, %v1633
  %v1638 = vmul.f32 %v1630, %v1634
  %v1639 = vmul.f32 %v1631, %v1635
  %1640 = vst [vmem:[%s8] sm:$0xff] %v1596
  %1641 = vst [vmem:[%s8 + $0x20] sm:$0xff] %v1597
  %1642 = vst [vmem:[%s8 + $0x40] sm:$0xff] %v1598
  %1643 = vst [vmem:[%s8 + $0x60] sm:$0xff] %v1599
  %1644 = vst [vmem:[%s7] sm:$0xff] %v1636
  %1645 = vst [vmem:[%s7 + $0x20] sm:$0xff] %v1637
  %1646 = vst [vmem:[%s7 + $0x40] sm:$0xff] %v1638
  %1647 = vst [vmem:[%s7 + $0x60] sm:$0xff] %v1639
  %s1648 = scalar_lea.vmem %s6, 8
  %v1649 = vld [vmem:[%s1648] sm:$0xff]
  %v1650 = vld [vmem:[%s1648 + $0x20] sm:$0xff]
  %v1651 = vld [vmem:[%s1648 + $0x40] sm:$0xff]
  %v1652 = vld [vmem:[%s1648 + $0x60] sm:$0xff]
  %s1653 = scalar_lea.vmem [#allocation2], 8
  %v1654 = vld [vmem:[%s1653] sm:$0xff]
  %v1655 = vld [vmem:[%s1653 + $0x20] sm:$0xff]
  %v1656 = vld [vmem:[%s1653 + $0x40] sm:$0xff]
  %v1657 = vld [vmem:[%s1653 + $0x60] sm:$0xff]
  %s1658 = scalar_lea.vmem %s3, 8
  %v1659 = vld [vmem:[%s1658] sm:$0xff]
  %v1660 = vld [vmem:[%s1658 + $0x20] sm:$0xff]
  %v1661 = vld [vmem:[%s1658 + $0x40] sm:$0xff]
  %v1662 = vld [vmem:[%s1658 + $0x60] sm:$0xff]
  %v1663 = vmul.f32 %v1659, %v1649
  %v1664 = vmul.f32 %v1660, %v1650
  %v1665 = vmul.f32 %v1661, %v1651
  %v1666 = vmul.f32 %v1662, %v1652
  %v1667 = vadd.f32 %v1654, %v1663
  %v1668 = vadd.f32 %v1655, %v1664
  %v1669 = vadd.f32 %v1656, %v1665
  %v1670 = vadd.f32 %v1657, %v1666
  %v1671 = vmul.f32 %v1667, 0.5
  %v1672 = vmul.f32 %v1668, 0.5
  %v1673 = vmul.f32 %v1669, 0.5
  %v1674 = vmul.f32 %v1670, 0.5
  %v1675 = vtanh.pop %v1671
  %v1676 = vtanh.pop %v1672
  %v1677 = vtanh.pop %v1673
  %v1678 = vtanh.pop %v1674
  %v1679 = vmul.f32 %v1675, 0.5
  %v1680 = vmul.f32 %v1676, 0.5
  %v1681 = vmul.f32 %v1677, 0.5
  %v1682 = vmul.f32 %v1678, 0.5
  %v1683 = vadd.f32 %v1679, 0.5
  %v1684 = vadd.f32 %v1680, 0.5
  %v1685 = vadd.f32 %v1681, 0.5
  %v1686 = vadd.f32 %v1682, 0.5
  %v1687 = vld [vmem:[%s1653 + $0x80] sm:$0xff]
  %v1688 = vld [vmem:[%s1653 + $0xa0] sm:$0xff]
  %v1689 = vld [vmem:[%s1653 + $0xc0] sm:$0xff]
  %v1690 = vld [vmem:[%s1653 + $0xe0] sm:$0xff]
  %s1691 = scalar_lea.vmem %s4, 8
  %v1692 = vld [vmem:[%s1691] sm:$0xff]
  %v1693 = vld [vmem:[%s1691 + $0x20] sm:$0xff]
  %v1694 = vld [vmem:[%s1691 + $0x40] sm:$0xff]
  %v1695 = vld [vmem:[%s1691 + $0x60] sm:$0xff]
  %v1696 = vmul.f32 %v1692, %v1649
  %v1697 = vmul.f32 %v1693, %v1650
  %v1698 = vmul.f32 %v1694, %v1651
  %v1699 = vmul.f32 %v1695, %v1652
  %v1700 = vadd.f32 %v1687, %v1696
  %v1701 = vadd.f32 %v1688, %v1697
  %v1702 = vadd.f32 %v1689, %v1698
  %v1703 = vadd.f32 %v1690, %v1699
  %v1704 = vmul.f32 %v1700, 0.5
  %v1705 = vmul.f32 %v1701, 0.5
  %v1706 = vmul.f32 %v1702, 0.5
  %v1707 = vmul.f32 %v1703, 0.5
  %v1708 = vtanh.pop %v1704
  %v1709 = vtanh.pop %v1705
  %v1710 = vtanh.pop %v1706
  %v1711 = vtanh.pop %v1707
  %v1712 = vmul.f32 %v1708, 0.5
  %v1713 = vmul.f32 %v1709, 0.5
  %v1714 = vmul.f32 %v1710, 0.5
  %v1715 = vmul.f32 %v1711, 0.5
  %v1716 = vadd.f32 %v1712, 0.5
  %v1717 = vadd.f32 %v1713, 0.5
  %v1718 = vadd.f32 %v1714, 0.5
  %v1719 = vadd.f32 %v1715, 0.5
  %v1720 = vld [vmem:[%s1653 + $0x100] sm:$0xff]
  %v1721 = vld [vmem:[%s1653 + $0x120] sm:$0xff]
  %v1722 = vld [vmem:[%s1653 + $0x140] sm:$0xff]
  %v1723 = vld [vmem:[%s1653 + $0x160] sm:$0xff]
  %v1724 = vtanh.pop %v1720
  %v1725 = vtanh.pop %v1721
  %v1726 = vtanh.pop %v1722
  %v1727 = vtanh.pop %v1723
  %v1728 = vmul.f32 %v1716, %v1649
  %v1729 = vmul.f32 %v1717, %v1650
  %v1730 = vmul.f32 %v1718, %v1651
  %v1731 = vmul.f32 %v1719, %v1652
  %v1732 = vmul.f32 %v1683, %v1724
  %v1733 = vmul.f32 %v1684, %v1725
  %v1734 = vmul.f32 %v1685, %v1726
  %v1735 = vmul.f32 %v1686, %v1727
  %v1736 = vadd.f32 %v1728, %v1732
  %v1737 = vadd.f32 %v1729, %v1733
  %v1738 = vadd.f32 %v1730, %v1734
  %v1739 = vadd.f32 %v1731, %v1735
  %v1740 = vld [vmem:[%s1653 + $0x180] sm:$0xff]
  %v1741 = vld [vmem:[%s1653 + $0x1a0] sm:$0xff]
  %v1742 = vld [vmem:[%s1653 + $0x1c0] sm:$0xff]
  %v1743 = vld [vmem:[%s1653 + $0x1e0] sm:$0xff]
  %s1744 = scalar_lea.vmem %s5, 8
  %v1745 = vld [vmem:[%s1744] sm:$0xff]
  %v1746 = vld [vmem:[%s1744 + $0x20] sm:$0xff]
  %v1747 = vld [vmem:[%s1744 + $0x40] sm:$0xff]
  %v1748 = vld [vmem:[%s1744 + $0x60] sm:$0xff]
  %v1749 = vmul.f32 %v1745, %v1736
  %v1750 = vmul.f32 %v1746, %v1737
  %v1751 = vmul.f32 %v1747, %v1738
  %v1752 = vmul.f32 %v1748, %v1739
  %v1753 = vadd.f32 %v1740, %v1749
  %v1754 = vadd.f32 %v1741, %v1750
  %v1755 = vadd.f32 %v1742, %v1751
  %v1756 = vadd.f32 %v1743, %v1752
  %v1757 = vmul.f32 %v1753, 0.5
  %v1758 = vmul.f32 %v1754, 0.5
  %v1759 = vmul.f32 %v1755, 0.5
  %v1760 = vmul.f32 %v1756, 0.5
  %v1761 = vtanh.pop %v1757
  %v1762 = vtanh.pop %v1758
  %v1763 = vtanh.pop %v1759
  %v1764 = vtanh.pop %v1760
  %v1765 = vmul.f32 %v1761, 0.5
  %v1766 = vmul.f32 %v1762, 0.5
  %v1767 = vmul.f32 %v1763, 0.5
  %v1768 = vmul.f32 %v1764, 0.5
  %v1769 = vadd.f32 %v1765, 0.5
  %v1770 = vadd.f32 %v1766, 0.5
  %v1771 = vadd.f32 %v1767, 0.5
  %v1772 = vadd.f32 %v1768, 0.5
  %v1773 = vtanh.pop %v1736
  %v1774 = vtanh.pop %v1737
  %v1775 = vtanh.pop %v1738
  %v1776 = vtanh.pop %v1739
  %v1777 = vmul.f32 %v1769, %v1773
  %v1778 = vmul.f32 %v1770, %v1774
  %v1779 = vmul.f32 %v1771, %v1775
  %v1780 = vmul.f32 %v1772, %v1776
  %s1781 = scalar_lea.vmem %s8, 8
  %1782 = vst [vmem:[%s1781] sm:$0xff] %v1736
  %1783 = vst [vmem:[%s1781 + $0x20] sm:$0xff] %v1737
  %1784 = vst [vmem:[%s1781 + $0x40] sm:$0xff] %v1738
  %1785 = vst [vmem:[%s1781 + $0x60] sm:$0xff] %v1739
  %s1786 = scalar_lea.vmem %s7, 8
  %1787 = vst [vmem:[%s1786] sm:$0xff] %v1777
  %1788 = vst [vmem:[%s1786 + $0x20] sm:$0xff] %v1778
  %1789 = vst [vmem:[%s1786 + $0x40] sm:$0xff] %v1779
  %1790 = vst [vmem:[%s1786 + $0x60] sm:$0xff] %v1780
  %s1791 = scalar_lea.vmem %s6, 16
  %v1792 = vld [vmem:[%s1791] sm:$0xff]
  %v1793 = vld [vmem:[%s1791 + $0x20] sm:$0xff]
  %v1794 = vld [vmem:[%s1791 + $0x40] sm:$0xff]
  %v1795 = vld [vmem:[%s1791 + $0x60] sm:$0xff]
  %s1796 = scalar_lea.vmem [#allocation2], 16
  %v1797 = vld [vmem:[%s1796] sm:$0xff]
  %v1798 = vld [vmem:[%s1796 + $0x20] sm:$0xff]
  %v1799 = vld [vmem:[%s1796 + $0x40] sm:$0xff]
  %v1800 = vld [vmem:[%s1796 + $0x60] sm:$0xff]
  %s1801 = scalar_lea.vmem %s3, 16
  %v1802 = vld [vmem:[%s1801] sm:$0xff]
  %v1803 = vld [vmem:[%s1801 + $0x20] sm:$0xff]
  %v1804 = vld [vmem:[%s1801 + $0x40] sm:$0xff]
  %v1805 = vld [vmem:[%s1801 + $0x60] sm:$0xff]
  %v1806 = vmul.f32 %v1802, %v1792
  %v1807 = vmul.f32 %v1803, %v1793
  %v1808 = vmul.f32 %v1804, %v1794
  %v1809 = vmul.f32 %v1805, %v1795
  %v1810 = vadd.f32 %v1797, %v1806
  %v1811 = vadd.f32 %v1798, %v1807
  %v1812 = vadd.f32 %v1799, %v1808
  %v1813 = vadd.f32 %v1800, %v1809
  %v1814 = vmul.f32 %v1810, 0.5
  %v1815 = vmul.f32 %v1811, 0.5
  %v1816 = vmul.f32 %v1812, 0.5
  %v1817 = vmul.f32 %v1813, 0.5
  %v1818 = vtanh.pop %v1814
  %v1819 = vtanh.pop %v1815
  %v1820 = vtanh.pop %v1816
  %v1821 = vtanh.pop %v1817
  %v1822 = vmul.f32 %v1818, 0.5
  %v1823 = vmul.f32 %v1819, 0.5
  %v1824 = vmul.f32 %v1820, 0.5
  %v1825 = vmul.f32 %v1821, 0.5
  %v1826 = vadd.f32 %v1822, 0.5
  %v1827 = vadd.f32 %v1823, 0.5
  %v1828 = vadd.f32 %v1824, 0.5
  %v1829 = vadd.f32 %v1825, 0.5
  %v1830 = vld [vmem:[%s1796 + $0x80] sm:$0xff]
  %v1831 = vld [vmem:[%s1796 + $0xa0] sm:$0xff]
  %v1832 = vld [vmem:[%s1796 + $0xc0] sm:$0xff]
  %v1833 = vld [vmem:[%s1796 + $0xe0] sm:$0xff]
  %s1834 = scalar_lea.vmem %s4, 16
  %v1835 = vld [vmem:[%s1834] sm:$0xff]
  %v1836 = vld [vmem:[%s1834 + $0x20] sm:$0xff]
  %v1837 = vld [vmem:[%s1834 + $0x40] sm:$0xff]
  %v1838 = vld [vmem:[%s1834 + $0x60] sm:$0xff]
  %v1839 = vmul.f32 %v1835, %v1792
  %v1840 = vmul.f32 %v1836, %v1793
  %v1841 = vmul.f32 %v1837, %v1794
  %v1842 = vmul.f32 %v1838, %v1795
  %v1843 = vadd.f32 %v1830, %v1839
  %v1844 = vadd.f32 %v1831, %v1840
  %v1845 = vadd.f32 %v1832, %v1841
  %v1846 = vadd.f32 %v1833, %v1842
  %v1847 = vmul.f32 %v1843, 0.5
  %v1848 = vmul.f32 %v1844, 0.5
  %v1849 = vmul.f32 %v1845, 0.5
  %v1850 = vmul.f32 %v1846, 0.5
  %v1851 = vtanh.pop %v1847
  %v1852 = vtanh.pop %v1848
  %v1853 = vtanh.pop %v1849
  %v1854 = vtanh.pop %v1850
  %v1855 = vmul.f32 %v1851, 0.5
  %v1856 = vmul.f32 %v1852, 0.5
  %v1857 = vmul.f32 %v1853, 0.5
  %v1858 = vmul.f32 %v1854, 0.5
  %v1859 = vadd.f32 %v1855, 0.5
  %v1860 = vadd.f32 %v1856, 0.5
  %v1861 = vadd.f32 %v1857, 0.5
  %v1862 = vadd.f32 %v1858, 0.5
  %v1863 = vld [vmem:[%s1796 + $0x100] sm:$0xff]
  %v1864 = vld [vmem:[%s1796 + $0x120] sm:$0xff]
  %v1865 = vld [vmem:[%s1796 + $0x140] sm:$0xff]
  %v1866 = vld [vmem:[%s1796 + $0x160] sm:$0xff]
  %v1867 = vtanh.pop %v1863
  %v1868 = vtanh.pop %v1864
  %v1869 = vtanh.pop %v1865
  %v1870 = vtanh.pop %v1866
  %v1871 = vmul.f32 %v1859, %v1792
  %v1872 = vmul.f32 %v1860, %v1793
  %v1873 = vmul.f32 %v1861, %v1794
  %v1874 = vmul.f32 %v1862, %v1795
  %v1875 = vmul.f32 %v1826, %v1867
  %v1876 = vmul.f32 %v1827, %v1868
  %v1877 = vmul.f32 %v1828, %v1869
  %v1878 = vmul.f32 %v1829, %v1870
  %v1879 = vadd.f32 %v1871, %v1875
  %v1880 = vadd.f32 %v1872, %v1876
  %v1881 = vadd.f32 %v1873, %v1877
  %v1882 = vadd.f32 %v1874, %v1878
  %v1883 = vld [vmem:[%s1796 + $0x180] sm:$0xff]
  %v1884 = vld [vmem:[%s1796 + $0x1a0] sm:$0xff]
  %v1885 = vld [vmem:[%s1796 + $0x1c0] sm:$0xff]
  %v1886 = vld [vmem:[%s1796 + $0x1e0] sm:$0xff]
  %s1887 = scalar_lea.vmem %s5, 16
  %v1888 = vld [vmem:[%s1887] sm:$0xff]
  %v1889 = vld [vmem:[%s1887 + $0x20] sm:$0xff]
  %v1890 = vld [vmem:[%s1887 + $0x40] sm:$0xff]
  %v1891 = vld [vmem:[%s1887 + $0x60] sm:$0xff]
  %v1892 = vmul.f32 %v1888, %v1879
  %v1893 = vmul.f32 %v1889, %v1880
  %v1894 = vmul.f32 %v1890, %v1881
  %v1895 = vmul.f32 %v1891, %v1882
  %v1896 = vadd.f32 %v1883, %v1892
  %v1897 = vadd.f32 %v1884, %v1893
  %v1898 = vadd.f32 %v1885, %v1894
  %v1899 = vadd.f32 %v1886, %v1895
  %v1900 = vmul.f32 %v1896, 0.5
  %v1901 = vmul.f32 %v1897, 0.5
  %v1902 = vmul.f32 %v1898, 0.5
  %v1903 = vmul.f32 %v1899, 0.5
  %v1904 = vtanh.pop %v1900
  %v1905 = vtanh.pop %v1901
  %v1906 = vtanh.pop %v1902
  %v1907 = vtanh.pop %v1903
  %v1908 = vmul.f32 %v1904, 0.5
  %v1909 = vmul.f32 %v1905, 0.5
  %v1910 = vmul.f32 %v1906, 0.5
  %v1911 = vmul.f32 %v1907, 0.5
  %v1912 = vadd.f32 %v1908, 0.5
  %v1913 = vadd.f32 %v1909, 0.5
  %v1914 = vadd.f32 %v1910, 0.5
  %v1915 = vadd.f32 %v1911, 0.5
  %v1916 = vtanh.pop %v1879
  %v1917 = vtanh.pop %v1880
  %v1918 = vtanh.pop %v1881
  %v1919 = vtanh.pop %v1882
  %v1920 = vmul.f32 %v1912, %v1916
  %v1921 = vmul.f32 %v1913, %v1917
  %v1922 = vmul.f32 %v1914, %v1918
  %v1923 = vmul.f32 %v1915, %v1919
  %s1924 = scalar_lea.vmem %s8, 16
  %1925 = vst [vmem:[%s1924] sm:$0xff] %v1879
  %1926 = vst [vmem:[%s1924 + $0x20] sm:$0xff] %v1880
  %1927 = vst [vmem:[%s1924 + $0x40] sm:$0xff] %v1881
  %1928 = vst [vmem:[%s1924 + $0x60] sm:$0xff] %v1882
  %s1929 = scalar_lea.vmem %s7, 16
  %1930 = vst [vmem:[%s1929] sm:$0xff] %v1920
  %1931 = vst [vmem:[%s1929 + $0x20] sm:$0xff] %v1921
  %1932 = vst [vmem:[%s1929 + $0x40] sm:$0xff] %v1922
  %1933 = vst [vmem:[%s1929 + $0x60] sm:$0xff] %v1923
  %s1934 = scalar_lea.vmem %s6, 24
  %v1935 = vld [vmem:[%s1934] sm:$0xff]
  %v1936 = vld [vmem:[%s1934 + $0x20] sm:$0xff]
  %v1937 = vld [vmem:[%s1934 + $0x40] sm:$0xff]
  %v1938 = vld [vmem:[%s1934 + $0x60] sm:$0xff]
  %s1939 = scalar_lea.vmem [#allocation2], 24
  %v1940 = vld [vmem:[%s1939] sm:$0xff]
  %v1941 = vld [vmem:[%s1939 + $0x20] sm:$0xff]
  %v1942 = vld [vmem:[%s1939 + $0x40] sm:$0xff]
  %v1943 = vld [vmem:[%s1939 + $0x60] sm:$0xff]
  %s1944 = scalar_lea.vmem %s3, 24
  %v1945 = vld [vmem:[%s1944] sm:$0xff]
  %v1946 = vld [vmem:[%s1944 + $0x20] sm:$0xff]
  %v1947 = vld [vmem:[%s1944 + $0x40] sm:$0xff]
  %v1948 = vld [vmem:[%s1944 + $0x60] sm:$0xff]
  %v1949 = vmul.f32 %v1945, %v1935
  %v1950 = vmul.f32 %v1946, %v1936
  %v1951 = vmul.f32 %v1947, %v1937
  %v1952 = vmul.f32 %v1948, %v1938
  %v1953 = vadd.f32 %v1940, %v1949
  %v1954 = vadd.f32 %v1941, %v1950
  %v1955 = vadd.f32 %v1942, %v1951
  %v1956 = vadd.f32 %v1943, %v1952
  %v1957 = vmul.f32 %v1953, 0.5
  %v1958 = vmul.f32 %v1954, 0.5
  %v1959 = vmul.f32 %v1955, 0.5
  %v1960 = vmul.f32 %v1956, 0.5
  %v1961 = vtanh.pop %v1957
  %v1962 = vtanh.pop %v1958
  %v1963 = vtanh.pop %v1959
  %v1964 = vtanh.pop %v1960
  %v1965 = vmul.f32 %v1961, 0.5
  %v1966 = vmul.f32 %v1962, 0.5
  %v1967 = vmul.f32 %v1963, 0.5
  %v1968 = vmul.f32 %v1964, 0.5
  %v1969 = vadd.f32 %v1965, 0.5
  %v1970 = vadd.f32 %v1966, 0.5
  %v1971 = vadd.f32 %v1967, 0.5
  %v1972 = vadd.f32 %v1968, 0.5
  %v1973 = vld [vmem:[%s1939 + $0x80] sm:$0xff]
  %v1974 = vld [vmem:[%s1939 + $0xa0] sm:$0xff]
  %v1975 = vld [vmem:[%s1939 + $0xc0] sm:$0xff]
  %v1976 = vld [vmem:[%s1939 + $0xe0] sm:$0xff]
  %s1977 = scalar_lea.vmem %s4, 24
  %v1978 = vld [vmem:[%s1977] sm:$0xff]
  %v1979 = vld [vmem:[%s1977 + $0x20] sm:$0xff]
  %v1980 = vld [vmem:[%s1977 + $0x40] sm:$0xff]
  %v1981 = vld [vmem:[%s1977 + $0x60] sm:$0xff]
  %v1982 = vmul.f32 %v1978, %v1935
  %v1983 = vmul.f32 %v1979, %v1936
  %v1984 = vmul.f32 %v1980, %v1937
  %v1985 = vmul.f32 %v1981, %v1938
  %v1986 = vadd.f32 %v1973, %v1982
  %v1987 = vadd.f32 %v1974, %v1983
  %v1988 = vadd.f32 %v1975, %v1984
  %v1989 = vadd.f32 %v1976, %v1985
  %v1990 = vmul.f32 %v1986, 0.5
  %v1991 = vmul.f32 %v1987, 0.5
  %v1992 = vmul.f32 %v1988, 0.5
  %v1993 = vmul.f32 %v1989, 0.5
  %v1994 = vtanh.pop %v1990
  %v1995 = vtanh.pop %v1991
  %v1996 = vtanh.pop %v1992
  %v1997 = vtanh.pop %v1993
  %v1998 = vmul.f32 %v1994, 0.5
  %v1999 = vmul.f32 %v1995, 0.5
  %v2000 = vmul.f32 %v1996, 0.5
  %v2001 = vmul.f32 %v1997, 0.5
  %v2002 = vadd.f32 %v1998, 0.5
  %v2003 = vadd.f32 %v1999, 0.5
  %v2004 = vadd.f32 %v2000, 0.5
  %v2005 = vadd.f32 %v2001, 0.5
  %v2006 = vld [vmem:[%s1939 + $0x100] sm:$0xff]
  %v2007 = vld [vmem:[%s1939 + $0x120] sm:$0xff]
  %v2008 = vld [vmem:[%s1939 + $0x140] sm:$0xff]
  %v2009 = vld [vmem:[%s1939 + $0x160] sm:$0xff]
  %v2010 = vtanh.pop %v2006
  %v2011 = vtanh.pop %v2007
  %v2012 = vtanh.pop %v2008
  %v2013 = vtanh.pop %v2009
  %v2014 = vmul.f32 %v2002, %v1935
  %v2015 = vmul.f32 %v2003, %v1936
  %v2016 = vmul.f32 %v2004, %v1937
  %v2017 = vmul.f32 %v2005, %v1938
  %v2018 = vmul.f32 %v1969, %v2010
  %v2019 = vmul.f32 %v1970, %v2011
  %v2020 = vmul.f32 %v1971, %v2012
  %v2021 = vmul.f32 %v1972, %v2013
  %v2022 = vadd.f32 %v2014, %v2018
  %v2023 = vadd.f32 %v2015, %v2019
  %v2024 = vadd.f32 %v2016, %v2020
  %v2025 = vadd.f32 %v2017, %v2021
  %v2026 = vld [vmem:[%s1939 + $0x180] sm:$0xff]
  %v2027 = vld [vmem:[%s1939 + $0x1a0] sm:$0xff]
  %v2028 = vld [vmem:[%s1939 + $0x1c0] sm:$0xff]
  %v2029 = vld [vmem:[%s1939 + $0x1e0] sm:$0xff]
  %s2030 = scalar_lea.vmem %s5, 24
  %v2031 = vld [vmem:[%s2030] sm:$0xff]
  %v2032 = vld [vmem:[%s2030 + $0x20] sm:$0xff]
  %v2033 = vld [vmem:[%s2030 + $0x40] sm:$0xff]
  %v2034 = vld [vmem:[%s2030 + $0x60] sm:$0xff]
  %v2035 = vmul.f32 %v2031, %v2022
  %v2036 = vmul.f32 %v2032, %v2023
  %v2037 = vmul.f32 %v2033, %v2024
  %v2038 = vmul.f32 %v2034, %v2025
  %v2039 = vadd.f32 %v2026, %v2035
  %v2040 = vadd.f32 %v2027, %v2036
  %v2041 = vadd.f32 %v2028, %v2037
  %v2042 = vadd.f32 %v2029, %v2038
  %v2043 = vmul.f32 %v2039, 0.5
  %v2044 = vmul.f32 %v2040, 0.5
  %v2045 = vmul.f32 %v2041, 0.5
  %v2046 = vmul.f32 %v2042, 0.5
  %v2047 = vtanh.pop %v2043
  %v2048 = vtanh.pop %v2044
  %v2049 = vtanh.pop %v2045
  %v2050 = vtanh.pop %v2046
  %v2051 = vmul.f32 %v2047, 0.5
  %v2052 = vmul.f32 %v2048, 0.5
  %v2053 = vmul.f32 %v2049, 0.5
  %v2054 = vmul.f32 %v2050, 0.5
  %v2055 = vadd.f32 %v2051, 0.5
  %v2056 = vadd.f32 %v2052, 0.5
  %v2057 = vadd.f32 %v2053, 0.5
  %v2058 = vadd.f32 %v2054, 0.5
  %v2059 = vtanh.pop %v2022
  %v2060 = vtanh.pop %v2023
  %v2061 = vtanh.pop %v2024
  %v2062 = vtanh.pop %v2025
  %v2063 = vmul.f32 %v2055, %v2059
  %v2064 = vmul.f32 %v2056, %v2060
  %v2065 = vmul.f32 %v2057, %v2061
  %v2066 = vmul.f32 %v2058, %v2062
  %s2067 = scalar_lea.vmem %s8, 24
  %2068 = vst [vmem:[%s2067] sm:$0xff] %v2022
  %2069 = vst [vmem:[%s2067 + $0x20] sm:$0xff] %v2023
  %2070 = vst [vmem:[%s2067 + $0x40] sm:$0xff] %v2024
  %2071 = vst [vmem:[%s2067 + $0x60] sm:$0xff] %v2025
  %s2072 = scalar_lea.vmem %s7, 24
  %2073 = vst [vmem:[%s2072] sm:$0xff] %v2063
  %2074 = vst [vmem:[%s2072 + $0x20] sm:$0xff] %v2064
  %2075 = vst [vmem:[%s2072 + $0x40] sm:$0xff] %v2065
  %2076 = vst [vmem:[%s2072 + $0x60] sm:$0xff] %v2066
  // Predicated region
  $region30: #{convlstm_cell_pallas.1} parent=0 // pred_check
    _
  $region31: #{convlstm_cell_pallas.1} parent=0 // pred_check_branch
    %2078 = sbr.rel (0) target = $region33
  $region32: #{convlstm_cell_pallas.1} parent=0 // pred_region
    _
  $region33: #{convlstm_cell_pallas.1} parent=0 // pred_fallthru
    _
  // Predicated region
  $region34: #{convlstm_cell_pallas.1} parent=0 // pred_check
    _
  $region35: #{convlstm_cell_pallas.1} parent=0 // pred_check_branch
    %2080 = sbr.rel (0) target = $region37
  $region36: #{convlstm_cell_pallas.1} parent=0 // pred_region
    _
  $region37: #{convlstm_cell_pallas.1} parent=0 // pred_fallthru
    _
  // Predicated region
  $region38: #{convlstm_cell_pallas.1} parent=0 // pred_check
    _
  $region39: #{convlstm_cell_pallas.1} parent=0 // pred_check_branch
    %2082 = sbr.rel (0) target = $region41
  $region40: #{convlstm_cell_pallas.1} parent=0 // pred_region
    _
  $region41: #{convlstm_cell_pallas.1} parent=0 // pred_fallthru
    _
  // Predicated region
  $region42: #{convlstm_cell_pallas.1} parent=0 // pred_check
    _
  $region43: #{convlstm_cell_pallas.1} parent=0 // pred_check_branch
    %2084 = sbr.rel (0) target = $region45
  $region44: #{convlstm_cell_pallas.1} parent=0 // pred_region
    _
  $region45: #{convlstm_cell_pallas.1} parent=0 // pred_fallthru
    _

</llo_original>
